<compile_context>
chip_gen: v5e
topology: v5e:2x2
jax: 0.10.0
libtpu: 0.0.40
codegen_flags: <defaults>
</compile_context>

<pallas_src>
import functools

import jax
import jax.numpy as jnp
from jax.experimental import pallas as pl
from jax.experimental.pallas import tpu as pltpu


# ----------------------------- Pallas kernel ------------------------------ #
def _lstm_query_encoder_kernel(
    x_ref,       # (1, T*Bt, F)   bf16   time-major per-batch-tile inputs
    len_ref,     # (1, Bt, 1)     int32  valid lengths
    wih0_ref,    # (F, 4H)        bf16   layer-0 input weights   (i,f,o,g cols)
    whh0_ref,    # (H, 4H)        bf16   layer-0 recurrent weights
    b0_ref,      # (1, 4H)        f32    layer-0 bias (b_ih + b_hh)
    wr_ref,      # (max(L-1,1), 2H, 4H) bf16  layers>=1 stacked [W_ih; W_hh]
    br_ref,      # (max(L-1,1), 1, 4H)  f32   layers>=1 bias
    out_ref,     # (Bt, H)        f32    last-layer h at t = length-1
    *,
    T: int,
    L: int,
):
    Bt, H = out_ref.shape
    fourH = 4 * H

    # --- hoist all weight / bias loads out of the time loop (one vld each) ---
    wih0 = wih0_ref[...]                                   # (F, 4H)  bf16
    whh0 = whh0_ref[...]                                   # (H, 4H)  bf16
    b0 = b0_ref[...]                                       # (1, 4H)  f32
    wr = [wr_ref[l] for l in range(L - 1)]                 # (2H, 4H) bf16 each
    br = [jnp.broadcast_to(br_ref[l], (Bt, fourH)) for l in range(L - 1)]
    lengths = len_ref[0]                                   # (Bt, 1)  int32

    # --- layer-0 input projection for all T steps: ONE MXU matmul ------------
    # rows of x are ordered t*Bt + b, so step t is the static slice below.
    xproj = (
        jnp.dot(x_ref[0], wih0, preferred_element_type=jnp.float32) + b0
    )                                                      # (T*Bt, 4H) f32

    # --- state lives in vregs (traced values), not VMEM scratch --------------
    h = [jnp.zeros((Bt, H), jnp.float32) for _ in range(L)]
    c = [jnp.zeros((Bt, H), jnp.float32) for _ in range(L)]
    out_acc = jnp.zeros((Bt, H), jnp.float32)

    def apply_gates(gates, c_prev):
        # packed gate order is (i, f, o, g): one sigmoid over 3H lanes,
        # one tanh over the last H lanes (single EUP push each).
        s = jax.nn.sigmoid(gates[:, : 3 * H])
        g = jnp.tanh(gates[:, 3 * H:])
        i_g = s[:, 0:H]
        f_g = s[:, H:2 * H]
        o_g = s[:, 2 * H:3 * H]
        c_new = f_g * c_prev + i_g * g
        h_new = o_g * jnp.tanh(c_new)
        return h_new, c_new

    # TODO(synk): if T grows beyond ~32, switch this Python unroll to a
    # lax.fori_loop(..., unroll=4) with (h, c, out_acc) as carries and a
    # pl.ds/multiple_of slice into xproj.
    for t in range(T):
        # ---- layer 0: only the recurrent matmul remains on the serial chain
        g0 = xproj[t * Bt:(t + 1) * Bt, :] + jnp.dot(
            h[0].astype(jnp.bfloat16), whh0, preferred_element_type=jnp.float32
        )
        h[0], c[0] = apply_gates(g0, c[0])
        layer_in = h[0]

        # ---- layers >= 1: single fused matmul per cell ----------------------
        for l in range(1, L):
            xh = jnp.concatenate([layer_in, h[l]], axis=1).astype(jnp.bfloat16)
            gl = (
                jnp.dot(xh, wr[l - 1], preferred_element_type=jnp.float32)
                + br[l - 1]
            )
            h[l], c[l] = apply_gates(gl, c[l])
            layer_in = h[l]

        # ---- capture last-layer h at each sequence's final valid step -------
        out_acc = jnp.where(lengths == (t + 1), layer_in, out_acc)

    # single store at the very end (padded rows keep their zero init).
    out_ref[...] = out_acc


# ------------------------------- Wrapper ----------------------------------- #
def _round_up(n, m):
    return ((n + m - 1) // m) * m


def _reorder_cols_ifgo_to_ifog(w_t, H):
    """Columns are PyTorch order (i,f,g,o); return order (i,f,o,g)."""
    return jnp.concatenate(
        [w_t[:, 0:2 * H], w_t[:, 3 * H:4 * H], w_t[:, 2 * H:3 * H]], axis=1
    )


def _reorder_vec(b, H):
    return jnp.concatenate([b[0:2 * H], b[3 * H:4 * H], b[2 * H:3 * H]], axis=0)


def lstm_query_encoder(x, lengths, params, *, num_layers, hidden_size):
    """x: (B, T, F) float, lengths: (B,) int -> (B, H) float32."""
    B, T, F = x.shape
    H = hidden_size
    L = num_layers
    assert L >= 1
    mxu_dtype = jnp.bfloat16  # MXU operands; all state/elementwise stays fp32

    # ---- weight packing: transpose, reorder gates to (i,f,o,g), stack -------
    wih0 = _reorder_cols_ifgo_to_ifog(params["weight_ih_l0"].T, H)
    whh0 = _reorder_cols_ifgo_to_ifog(params["weight_hh_l0"].T, H)
    b0 = _reorder_vec(
        params["bias_ih_l0"] + params["bias_hh_l0"], H
    ).reshape(1, 4 * H)
    if L > 1:
        wr = jnp.stack(
            [
                jnp.concatenate(
                    [
                        _reorder_cols_ifgo_to_ifog(
                            params[f"weight_ih_l{l}"].T, H),
                        _reorder_cols_ifgo_to_ifog(
                            params[f"weight_hh_l{l}"].T, H),
                    ],
                    axis=0,
                )
                for l in range(1, L)
            ]
        )                                                   # (L-1, 2H, 4H)
        br = jnp.stack(
            [
                _reorder_vec(
                    params[f"bias_ih_l{l}"] + params[f"bias_hh_l{l}"], H
                ).reshape(1, 4 * H)
                for l in range(1, L)
            ]
        )                                                   # (L-1, 1, 4H)
    else:
        wr = jnp.zeros((1, 2 * H, 4 * H), jnp.float32)      # dummies, unread
        br = jnp.zeros((1, 1, 4 * H), jnp.float32)

    wih0 = wih0.astype(mxu_dtype)
    whh0 = whh0.astype(mxu_dtype)
    wr = wr.astype(mxu_dtype)
    b0 = b0.astype(jnp.float32)
    br = br.astype(jnp.float32)

    # ---- batch padding to a multiple of 8, tiled over a parallel grid -------
    B_tile = min(_round_up(B, 8), 128)
    Bp = _round_up(B, B_tile)
    nb = Bp // B_tile

    xp = jnp.zeros((Bp, T, F), jnp.float32).at[:B].set(x.astype(jnp.float32))
    lp = jnp.zeros((Bp,), jnp.int32).at[:B].set(lengths.astype(jnp.int32))

    # layout: (nb, T*B_tile, F) with row index t*B_tile + b inside each tile,
    # so the layer-0 projection is one matmul and per-step slices are static.
    xg = (
        xp.reshape(nb, B_tile, T, F)
        .transpose(0, 2, 1, 3)
        .reshape(nb, T * B_tile, F)
        .astype(mxu_dtype)
    )
    lg = lp.reshape(nb, B_tile, 1)

    kernel = functools.partial(_lstm_query_encoder_kernel, T=T, L=L)

    const2 = lambda i: (0, 0)
    const3 = lambda i: (0, 0, 0)
    out = pl.pallas_call(
        kernel,
        out_shape=jax.ShapeDtypeStruct((Bp, H), jnp.float32),
        grid=(nb,),
        in_specs=[
            pl.BlockSpec((1, T * B_tile, F), lambda i: (i, 0, 0)),
            pl.BlockSpec((1, B_tile, 1), lambda i: (i, 0, 0)),
            pl.BlockSpec((F, 4 * H), const2),
            pl.BlockSpec((H, 4 * H), const2),
            pl.BlockSpec((1, 4 * H), const2),
            pl.BlockSpec((max(L - 1, 1), 2 * H, 4 * H), const3),
            pl.BlockSpec((max(L - 1, 1), 1, 4 * H), const3),
        ],
        out_specs=pl.BlockSpec((B_tile, H), lambda i: (i, 0)),
        compiler_params=pltpu.CompilerParams(
            dimension_semantics=("parallel",)
        ),
    )(xg, lg, wih0, whh0, b0, wr, br)
    return out[:B]


# --------------------------- Pure-JAX reference ---------------------------- #
def lstm_query_encoder_ref(
    x, lengths, params, *, num_layers, hidden_size, mxu_dtype=jnp.float32
):
    """Reference LSTM; `mxu_dtype` mirrors the kernel's MXU operand rounding."""
    B, T, F = x.shape
    H = hidden_size
    L = num_layers

    def rnd(a):
        return a.astype(mxu_dtype).astype(jnp.float32)

    h = [jnp.zeros((B, H), jnp.float32) for _ in range(L)]
    c = [jnp.zeros((B, H), jnp.float32) for _ in range(L)]
    out = jnp.zeros((B, H), jnp.float32)
    for t in range(T):
        layer_in = x[:, t, :].astype(jnp.float32)
        for l in range(L):
            wih = params[f"weight_ih_l{l}"]
            whh = params[f"weight_hh_l{l}"]
            b = params[f"bias_ih_l{l}"] + params[f"bias_hh_l{l}"]
            gates = rnd(layer_in) @ rnd(wih.T) + rnd(h[l]) @ rnd(whh.T) + b
            i = jax.nn.sigmoid(gates[:, 0 * H:1 * H])
            f = jax.nn.sigmoid(gates[:, 1 * H:2 * H])
            g = jnp.tanh(gates[:, 2 * H:3 * H])
            o = jax.nn.sigmoid(gates[:, 3 * H:4 * H])
            c[l] = f * c[l] + i * g
            h[l] = o * jnp.tanh(c[l])
            layer_in = h[l]
        mask = (lengths == (t + 1))[:, None]
        out = jnp.where(mask, layer_in, out)
    return out


# ------------------------------- Parameters -------------------------------- #
def init_lstm_params(key, input_size, hidden_size, num_layers):
    """Deterministic init mimicking PyTorch nn.LSTM parameter shapes."""
    params = {}
    k = 1.0 / jnp.sqrt(hidden_size)
    for l in range(num_layers):
        in_sz = input_size if l == 0 else hidden_size
        key, k1, k2, k3, k4 = jax.random.split(key, 5)
        params[f"weight_ih_l{l}"] = jax.random.uniform(
            k1, (4 * hidden_size, in_sz), jnp.float32, -k, k)
        params[f"weight_hh_l{l}"] = jax.random.uniform(
            k2, (4 * hidden_size, hidden_size), jnp.float32, -k, k)
        params[f"bias_ih_l{l}"] = jax.random.uniform(
            k3, (4 * hidden_size,), jnp.float32, -k, k)
        params[f"bias_hh_l{l}"] = jax.random.uniform(
            k4, (4 * hidden_size,), jnp.float32, -k, k)
    return params


# ---------------------------------- Main ------------------------------------ #
if __name__ == "__main__":
    B, T, F = 4, 8, 4          # batch, seq length, n_features (input_size)
    H, L = 32, 2               # hidden_size, num_layers

    key = jax.random.PRNGKey(0)
    kx, kp = jax.random.split(key)
    x = jax.random.normal(kx, (B, T, F), jnp.float32)
    lengths = jnp.array([8, 5, 3, 6], dtype=jnp.int32)   # variable lengths
    params = init_lstm_params(kp, F, H, L)

    out = lstm_query_encoder(x, lengths, params, num_layers=L, hidden_size=H)
    out = jax.block_until_ready(out)
    assert out.shape == (B, H)

    # Exact-math check (reference mirrors the kernel's bf16 MXU operands).
    ref_bf16 = lstm_query_encoder_ref(
        x, lengths, params, num_layers=L, hidden_size=H, mxu_dtype=jnp.bfloat16)
    err = jnp.max(jnp.abs(out - ref_bf16))
    assert jnp.allclose(out, ref_bf16, atol=5e-3, rtol=5e-3), f"max err {err}"

    # Semantic fidelity vs full-fp32 LSTM (loose: bf16 MXU operand rounding).
    ref_f32 = lstm_query_encoder_ref(
        x, lengths, params, num_layers=L, hidden_size=H, mxu_dtype=jnp.float32)
    err32 = jnp.max(jnp.abs(out - ref_f32))
    assert jnp.allclose(out, ref_f32, atol=1e-1, rtol=1e-1), f"max err {err32}"

    print("KERNEL_OK")
</pallas_src>

<mosaic_0001>
module attributes {stable_mosaic.version = 11 : i64} {
  func.func @_lstm_query_encoder_kernel(%arg0: i32, %arg1: memref<1x64x4xbf16, #tpu.memory_space<vmem>>, %arg2: memref<1x8x1xi32, #tpu.memory_space<vmem>>, %arg3: memref<4x128xbf16, #tpu.memory_space<vmem>>, %arg4: memref<32x128xbf16, #tpu.memory_space<vmem>>, %arg5: memref<1x128xf32, #tpu.memory_space<vmem>>, %arg6: memref<1x64x128xbf16, #tpu.memory_space<vmem>>, %arg7: memref<1x1x128xf32, #tpu.memory_space<vmem>>, %arg8: memref<8x32xf32, #tpu.memory_space<vmem>>) attributes {dimension_semantics = [#tpu.dimension_semantics<parallel>], iteration_bounds = array<i64: 1>, scalar_prefetch = 0 : i64, scratch_operands = 0 : i64, tpu.core_type = #tpu.core_type<tc>, window_params = [{transform_indices = @transform_0, window_bounds = array<i64: 1, 64, 4>}, {transform_indices = @transform_1, window_bounds = array<i64: 1, 8, 1>}, {pipeline_mode = #tpu.pipeline_mode<synchronous>, transform_indices = @transform_2, window_bounds = array<i64: 4, 128>}, {pipeline_mode = #tpu.pipeline_mode<synchronous>, transform_indices = @transform_3, window_bounds = array<i64: 32, 128>}, {pipeline_mode = #tpu.pipeline_mode<synchronous>, transform_indices = @transform_4, window_bounds = array<i64: 1, 128>}, {pipeline_mode = #tpu.pipeline_mode<synchronous>, transform_indices = @transform_5, window_bounds = array<i64: 1, 64, 128>}, {pipeline_mode = #tpu.pipeline_mode<synchronous>, transform_indices = @transform_6, window_bounds = array<i64: 1, 1, 128>}, {transform_indices = @transform_7, window_bounds = array<i64: 8, 32>}]} {
    %c0 = arith.constant 0 : index
    %c0_0 = arith.constant 0 : index
    %0 = vector.load %arg3[%c0, %c0_0] : memref<4x128xbf16, #tpu.memory_space<vmem>>, vector<4x128xbf16>
    %c0_1 = arith.constant 0 : index
    %c0_2 = arith.constant 0 : index
    %1 = vector.load %arg4[%c0_1, %c0_2] : memref<32x128xbf16, #tpu.memory_space<vmem>>, vector<32x128xbf16>
    %c0_3 = arith.constant 0 : index
    %c0_4 = arith.constant 0 : index
    %2 = vector.load %arg5[%c0_3, %c0_4] : memref<1x128xf32, #tpu.memory_space<vmem>>, vector<1x128xf32>
    %c0_5 = arith.constant 0 : index
    %c0_6 = arith.constant 0 : index
    %c0_7 = arith.constant 0 : index
    %3 = vector.load %arg6[%c0_5, %c0_6, %c0_7] : memref<1x64x128xbf16, #tpu.memory_space<vmem>>, vector<1x64x128xbf16>
    %4 = vector.shape_cast %3 : vector<1x64x128xbf16> to vector<64x128xbf16>
    %c0_8 = arith.constant 0 : index
    %c0_9 = arith.constant 0 : index
    %c0_10 = arith.constant 0 : index
    %5 = vector.load %arg7[%c0_8, %c0_9, %c0_10] : memref<1x1x128xf32, #tpu.memory_space<vmem>>, vector<1x1x128xf32>
    %6 = vector.shape_cast %5 : vector<1x1x128xf32> to vector<1x128xf32>
    %7 = vector.shape_cast %6 : vector<1x128xf32> to vector<1x128xf32>
    %8 = vector.broadcast %7 : vector<1x128xf32> to vector<8x128xf32>
    %c0_11 = arith.constant 0 : index
    %c0_12 = arith.constant 0 : index
    %c0_13 = arith.constant 0 : index
    %9 = vector.load %arg2[%c0_11, %c0_12, %c0_13] : memref<1x8x1xi32, #tpu.memory_space<vmem>>, vector<1x8x1xi32>
    %10 = vector.shape_cast %9 : vector<1x8x1xi32> to vector<8x1xi32>
    %c0_14 = arith.constant 0 : index
    %c0_15 = arith.constant 0 : index
    %c0_16 = arith.constant 0 : index
    %11 = vector.load %arg1[%c0_14, %c0_15, %c0_16] : memref<1x64x4xbf16, #tpu.memory_space<vmem>>, vector<1x64x4xbf16>
    %12 = vector.shape_cast %11 : vector<1x64x4xbf16> to vector<64x4xbf16>
    %cst = arith.constant dense<0.000000e+00> : vector<64x128xf32>
    %13 = tpu.matmul %12, %0, %cst {dimension_numbers = #tpu.dot_dimension_numbers<[1], [0], [0], [1], [0, 0, 1, 1], [], []>} : vector<64x4xbf16>, vector<4x128xbf16>, vector<64x128xf32> -> vector<64x128xf32>
    %14 = vector.broadcast %2 : vector<1x128xf32> to vector<64x128xf32>
    %15 = arith.addf %13, %14 : vector<64x128xf32>
    %cst_17 = arith.constant 0.000000e+00 : f32
    %16 = vector.broadcast %cst_17 : f32 to vector<8x32xf32>
    %cst_18 = arith.constant 0.000000e+00 : f32
    %17 = vector.broadcast %cst_18 : f32 to vector<8x32xf32>
    %cst_19 = arith.constant 0.000000e+00 : f32
    %18 = vector.broadcast %cst_19 : f32 to vector<8x32xf32>
    %cst_20 = arith.constant 0.000000e+00 : f32
    %19 = vector.broadcast %cst_20 : f32 to vector<8x32xf32>
    %cst_21 = arith.constant 0.000000e+00 : f32
    %20 = vector.broadcast %cst_21 : f32 to vector<8x32xf32>
    %21 = vector.extract_strided_slice %15 {offsets = [0, 0], sizes = [8, 128], strides = [1, 1]} : vector<64x128xf32> to vector<8x128xf32>
    %22 = arith.truncf %16 : vector<8x32xf32> to vector<8x32xbf16>
    %cst_22 = arith.constant dense<0.000000e+00> : vector<8x128xf32>
    %23 = tpu.matmul %22, %1, %cst_22 {dimension_numbers = #tpu.dot_dimension_numbers<[1], [0], [0], [1], [0, 0, 1, 1], [], []>} : vector<8x32xbf16>, vector<32x128xbf16>, vector<8x128xf32> -> vector<8x128xf32>
    %24 = arith.addf %21, %23 : vector<8x128xf32>
    %25 = vector.extract_strided_slice %24 {offsets = [0, 0], sizes = [8, 96], strides = [1, 1]} : vector<8x128xf32> to vector<8x96xf32>
    %26 = arith.negf %25 : vector<8x96xf32>
    %27 = math.exp %26 : vector<8x96xf32>
    %cst_23 = arith.constant 1.000000e+00 : f32
    %28 = vector.broadcast %cst_23 : f32 to vector<8x96xf32>
    %29 = arith.addf %28, %27 : vector<8x96xf32>
    %30 = arith.divf %28, %29 : vector<8x96xf32>
    %31 = vector.extract_strided_slice %24 {offsets = [0, 96], sizes = [8, 32], strides = [1, 1]} : vector<8x128xf32> to vector<8x32xf32>
    %32 = math.tanh %31 : vector<8x32xf32>
    %33 = vector.extract_strided_slice %30 {offsets = [0, 0], sizes = [8, 32], strides = [1, 1]} : vector<8x96xf32> to vector<8x32xf32>
    %34 = vector.extract_strided_slice %30 {offsets = [0, 32], sizes = [8, 32], strides = [1, 1]} : vector<8x96xf32> to vector<8x32xf32>
    %35 = vector.extract_strided_slice %30 {offsets = [0, 64], sizes = [8, 32], strides = [1, 1]} : vector<8x96xf32> to vector<8x32xf32>
    %36 = arith.mulf %34, %18 : vector<8x32xf32>
    %37 = arith.mulf %33, %32 : vector<8x32xf32>
    %38 = arith.addf %36, %37 : vector<8x32xf32>
    %39 = math.tanh %38 : vector<8x32xf32>
    %40 = arith.mulf %35, %39 : vector<8x32xf32>
    %41 = tpu.concatenate %40, %17 in 1 : vector<8x32xf32>, vector<8x32xf32> -> vector<8x64xf32>
    %42 = arith.truncf %41 : vector<8x64xf32> to vector<8x64xbf16>
    %cst_24 = arith.constant dense<0.000000e+00> : vector<8x128xf32>
    %43 = tpu.matmul %42, %4, %cst_24 {dimension_numbers = #tpu.dot_dimension_numbers<[1], [0], [0], [1], [0, 0, 1, 1], [], []>} : vector<8x64xbf16>, vector<64x128xbf16>, vector<8x128xf32> -> vector<8x128xf32>
    %44 = arith.addf %43, %8 : vector<8x128xf32>
    %45 = vector.extract_strided_slice %44 {offsets = [0, 0], sizes = [8, 96], strides = [1, 1]} : vector<8x128xf32> to vector<8x96xf32>
    %46 = arith.negf %45 : vector<8x96xf32>
    %47 = math.exp %46 : vector<8x96xf32>
    %cst_25 = arith.constant 1.000000e+00 : f32
    %48 = vector.broadcast %cst_25 : f32 to vector<8x96xf32>
    %49 = arith.addf %48, %47 : vector<8x96xf32>
    %50 = arith.divf %48, %49 : vector<8x96xf32>
    %51 = vector.extract_strided_slice %44 {offsets = [0, 96], sizes = [8, 32], strides = [1, 1]} : vector<8x128xf32> to vector<8x32xf32>
    %52 = math.tanh %51 : vector<8x32xf32>
    %53 = vector.extract_strided_slice %50 {offsets = [0, 0], sizes = [8, 32], strides = [1, 1]} : vector<8x96xf32> to vector<8x32xf32>
    %54 = vector.extract_strided_slice %50 {offsets = [0, 32], sizes = [8, 32], strides = [1, 1]} : vector<8x96xf32> to vector<8x32xf32>
    %55 = vector.extract_strided_slice %50 {offsets = [0, 64], sizes = [8, 32], strides = [1, 1]} : vector<8x96xf32> to vector<8x32xf32>
    %56 = arith.mulf %54, %19 : vector<8x32xf32>
    %57 = arith.mulf %53, %52 : vector<8x32xf32>
    %58 = arith.addf %56, %57 : vector<8x32xf32>
    %59 = math.tanh %58 : vector<8x32xf32>
    %60 = arith.mulf %55, %59 : vector<8x32xf32>
    %c1_i32 = arith.constant 1 : i32
    %61 = vector.broadcast %c1_i32 : i32 to vector<8x1xi32>
    %62 = arith.cmpi eq, %10, %61 : vector<8x1xi32>
    %63 = vector.shape_cast %62 : vector<8x1xi1> to vector<8x1xi1>
    %64 = vector.broadcast %63 : vector<8x1xi1> to vector<8x32xi1>
    %65 = arith.select %64, %60, %20 : vector<8x32xi1>, vector<8x32xf32>
    %66 = vector.extract_strided_slice %15 {offsets = [8, 0], sizes = [8, 128], strides = [1, 1]} : vector<64x128xf32> to vector<8x128xf32>
    %67 = arith.truncf %40 : vector<8x32xf32> to vector<8x32xbf16>
    %cst_26 = arith.constant dense<0.000000e+00> : vector<8x128xf32>
    %68 = tpu.matmul %67, %1, %cst_26 {dimension_numbers = #tpu.dot_dimension_numbers<[1], [0], [0], [1], [0, 0, 1, 1], [], []>} : vector<8x32xbf16>, vector<32x128xbf16>, vector<8x128xf32> -> vector<8x128xf32>
    %69 = arith.addf %66, %68 : vector<8x128xf32>
    %70 = vector.extract_strided_slice %69 {offsets = [0, 0], sizes = [8, 96], strides = [1, 1]} : vector<8x128xf32> to vector<8x96xf32>
    %71 = arith.negf %70 : vector<8x96xf32>
    %72 = math.exp %71 : vector<8x96xf32>
    %cst_27 = arith.constant 1.000000e+00 : f32
    %73 = vector.broadcast %cst_27 : f32 to vector<8x96xf32>
    %74 = arith.addf %73, %72 : vector<8x96xf32>
    %75 = arith.divf %73, %74 : vector<8x96xf32>
    %76 = vector.extract_strided_slice %69 {offsets = [0, 96], sizes = [8, 32], strides = [1, 1]} : vector<8x128xf32> to vector<8x32xf32>
    %77 = math.tanh %76 : vector<8x32xf32>
    %78 = vector.extract_strided_slice %75 {offsets = [0, 0], sizes = [8, 32], strides = [1, 1]} : vector<8x96xf32> to vector<8x32xf32>
    %79 = vector.extract_strided_slice %75 {offsets = [0, 32], sizes = [8, 32], strides = [1, 1]} : vector<8x96xf32> to vector<8x32xf32>
    %80 = vector.extract_strided_slice %75 {offsets = [0, 64], sizes = [8, 32], strides = [1, 1]} : vector<8x96xf32> to vector<8x32xf32>
    %81 = arith.mulf %79, %38 : vector<8x32xf32>
    %82 = arith.mulf %78, %77 : vector<8x32xf32>
    %83 = arith.addf %81, %82 : vector<8x32xf32>
    %84 = math.tanh %83 : vector<8x32xf32>
    %85 = arith.mulf %80, %84 : vector<8x32xf32>
    %86 = tpu.concatenate %85, %60 in 1 : vector<8x32xf32>, vector<8x32xf32> -> vector<8x64xf32>
    %87 = arith.truncf %86 : vector<8x64xf32> to vector<8x64xbf16>
    %cst_28 = arith.constant dense<0.000000e+00> : vector<8x128xf32>
    %88 = tpu.matmul %87, %4, %cst_28 {dimension_numbers = #tpu.dot_dimension_numbers<[1], [0], [0], [1], [0, 0, 1, 1], [], []>} : vector<8x64xbf16>, vector<64x128xbf16>, vector<8x128xf32> -> vector<8x128xf32>
    %89 = arith.addf %88, %8 : vector<8x128xf32>
    %90 = vector.extract_strided_slice %89 {offsets = [0, 0], sizes = [8, 96], strides = [1, 1]} : vector<8x128xf32> to vector<8x96xf32>
    %91 = arith.negf %90 : vector<8x96xf32>
    %92 = math.exp %91 : vector<8x96xf32>
    %cst_29 = arith.constant 1.000000e+00 : f32
    %93 = vector.broadcast %cst_29 : f32 to vector<8x96xf32>
    %94 = arith.addf %93, %92 : vector<8x96xf32>
    %95 = arith.divf %93, %94 : vector<8x96xf32>
    %96 = vector.extract_strided_slice %89 {offsets = [0, 96], sizes = [8, 32], strides = [1, 1]} : vector<8x128xf32> to vector<8x32xf32>
    %97 = math.tanh %96 : vector<8x32xf32>
    %98 = vector.extract_strided_slice %95 {offsets = [0, 0], sizes = [8, 32], strides = [1, 1]} : vector<8x96xf32> to vector<8x32xf32>
    %99 = vector.extract_strided_slice %95 {offsets = [0, 32], sizes = [8, 32], strides = [1, 1]} : vector<8x96xf32> to vector<8x32xf32>
    %100 = vector.extract_strided_slice %95 {offsets = [0, 64], sizes = [8, 32], strides = [1, 1]} : vector<8x96xf32> to vector<8x32xf32>
    %101 = arith.mulf %99, %58 : vector<8x32xf32>
    %102 = arith.mulf %98, %97 : vector<8x32xf32>
    %103 = arith.addf %101, %102 : vector<8x32xf32>
    %104 = math.tanh %103 : vector<8x32xf32>
    %105 = arith.mulf %100, %104 : vector<8x32xf32>
    %c2_i32 = arith.constant 2 : i32
    %106 = vector.broadcast %c2_i32 : i32 to vector<8x1xi32>
    %107 = arith.cmpi eq, %10, %106 : vector<8x1xi32>
    %108 = vector.shape_cast %107 : vector<8x1xi1> to vector<8x1xi1>
    %109 = vector.broadcast %108 : vector<8x1xi1> to vector<8x32xi1>
    %110 = arith.select %109, %105, %65 : vector<8x32xi1>, vector<8x32xf32>
    %111 = vector.extract_strided_slice %15 {offsets = [16, 0], sizes = [8, 128], strides = [1, 1]} : vector<64x128xf32> to vector<8x128xf32>
    %112 = arith.truncf %85 : vector<8x32xf32> to vector<8x32xbf16>
    %cst_30 = arith.constant dense<0.000000e+00> : vector<8x128xf32>
    %113 = tpu.matmul %112, %1, %cst_30 {dimension_numbers = #tpu.dot_dimension_numbers<[1], [0], [0], [1], [0, 0, 1, 1], [], []>} : vector<8x32xbf16>, vector<32x128xbf16>, vector<8x128xf32> -> vector<8x128xf32>
    %114 = arith.addf %111, %113 : vector<8x128xf32>
    %115 = vector.extract_strided_slice %114 {offsets = [0, 0], sizes = [8, 96], strides = [1, 1]} : vector<8x128xf32> to vector<8x96xf32>
    %116 = arith.negf %115 : vector<8x96xf32>
    %117 = math.exp %116 : vector<8x96xf32>
    %cst_31 = arith.constant 1.000000e+00 : f32
    %118 = vector.broadcast %cst_31 : f32 to vector<8x96xf32>
    %119 = arith.addf %118, %117 : vector<8x96xf32>
    %120 = arith.divf %118, %119 : vector<8x96xf32>
    %121 = vector.extract_strided_slice %114 {offsets = [0, 96], sizes = [8, 32], strides = [1, 1]} : vector<8x128xf32> to vector<8x32xf32>
    %122 = math.tanh %121 : vector<8x32xf32>
    %123 = vector.extract_strided_slice %120 {offsets = [0, 0], sizes = [8, 32], strides = [1, 1]} : vector<8x96xf32> to vector<8x32xf32>
    %124 = vector.extract_strided_slice %120 {offsets = [0, 32], sizes = [8, 32], strides = [1, 1]} : vector<8x96xf32> to vector<8x32xf32>
    %125 = vector.extract_strided_slice %120 {offsets = [0, 64], sizes = [8, 32], strides = [1, 1]} : vector<8x96xf32> to vector<8x32xf32>
    %126 = arith.mulf %124, %83 : vector<8x32xf32>
    %127 = arith.mulf %123, %122 : vector<8x32xf32>
    %128 = arith.addf %126, %127 : vector<8x32xf32>
    %129 = math.tanh %128 : vector<8x32xf32>
    %130 = arith.mulf %125, %129 : vector<8x32xf32>
    %131 = tpu.concatenate %130, %105 in 1 : vector<8x32xf32>, vector<8x32xf32> -> vector<8x64xf32>
    %132 = arith.truncf %131 : vector<8x64xf32> to vector<8x64xbf16>
    %cst_32 = arith.constant dense<0.000000e+00> : vector<8x128xf32>
    %133 = tpu.matmul %132, %4, %cst_32 {dimension_numbers = #tpu.dot_dimension_numbers<[1], [0], [0], [1], [0, 0, 1, 1], [], []>} : vector<8x64xbf16>, vector<64x128xbf16>, vector<8x128xf32> -> vector<8x128xf32>
    %134 = arith.addf %133, %8 : vector<8x128xf32>
    %135 = vector.extract_strided_slice %134 {offsets = [0, 0], sizes = [8, 96], strides = [1, 1]} : vector<8x128xf32> to vector<8x96xf32>
    %136 = arith.negf %135 : vector<8x96xf32>
    %137 = math.exp %136 : vector<8x96xf32>
    %cst_33 = arith.constant 1.000000e+00 : f32
    %138 = vector.broadcast %cst_33 : f32 to vector<8x96xf32>
    %139 = arith.addf %138, %137 : vector<8x96xf32>
    %140 = arith.divf %138, %139 : vector<8x96xf32>
    %141 = vector.extract_strided_slice %134 {offsets = [0, 96], sizes = [8, 32], strides = [1, 1]} : vector<8x128xf32> to vector<8x32xf32>
    %142 = math.tanh %141 : vector<8x32xf32>
    %143 = vector.extract_strided_slice %140 {offsets = [0, 0], sizes = [8, 32], strides = [1, 1]} : vector<8x96xf32> to vector<8x32xf32>
    %144 = vector.extract_strided_slice %140 {offsets = [0, 32], sizes = [8, 32], strides = [1, 1]} : vector<8x96xf32> to vector<8x32xf32>
    %145 = vector.extract_strided_slice %140 {offsets = [0, 64], sizes = [8, 32], strides = [1, 1]} : vector<8x96xf32> to vector<8x32xf32>
    %146 = arith.mulf %144, %103 : vector<8x32xf32>
    %147 = arith.mulf %143, %142 : vector<8x32xf32>
    %148 = arith.addf %146, %147 : vector<8x32xf32>
    %149 = math.tanh %148 : vector<8x32xf32>
    %150 = arith.mulf %145, %149 : vector<8x32xf32>
    %c3_i32 = arith.constant 3 : i32
    %151 = vector.broadcast %c3_i32 : i32 to vector<8x1xi32>
    %152 = arith.cmpi eq, %10, %151 : vector<8x1xi32>
    %153 = vector.shape_cast %152 : vector<8x1xi1> to vector<8x1xi1>
    %154 = vector.broadcast %153 : vector<8x1xi1> to vector<8x32xi1>
    %155 = arith.select %154, %150, %110 : vector<8x32xi1>, vector<8x32xf32>
    %156 = vector.extract_strided_slice %15 {offsets = [24, 0], sizes = [8, 128], strides = [1, 1]} : vector<64x128xf32> to vector<8x128xf32>
    %157 = arith.truncf %130 : vector<8x32xf32> to vector<8x32xbf16>
    %cst_34 = arith.constant dense<0.000000e+00> : vector<8x128xf32>
    %158 = tpu.matmul %157, %1, %cst_34 {dimension_numbers = #tpu.dot_dimension_numbers<[1], [0], [0], [1], [0, 0, 1, 1], [], []>} : vector<8x32xbf16>, vector<32x128xbf16>, vector<8x128xf32> -> vector<8x128xf32>
    %159 = arith.addf %156, %158 : vector<8x128xf32>
    %160 = vector.extract_strided_slice %159 {offsets = [0, 0], sizes = [8, 96], strides = [1, 1]} : vector<8x128xf32> to vector<8x96xf32>
    %161 = arith.negf %160 : vector<8x96xf32>
    %162 = math.exp %161 : vector<8x96xf32>
    %cst_35 = arith.constant 1.000000e+00 : f32
    %163 = vector.broadcast %cst_35 : f32 to vector<8x96xf32>
    %164 = arith.addf %163, %162 : vector<8x96xf32>
    %165 = arith.divf %163, %164 : vector<8x96xf32>
    %166 = vector.extract_strided_slice %159 {offsets = [0, 96], sizes = [8, 32], strides = [1, 1]} : vector<8x128xf32> to vector<8x32xf32>
    %167 = math.tanh %166 : vector<8x32xf32>
    %168 = vector.extract_strided_slice %165 {offsets = [0, 0], sizes = [8, 32], strides = [1, 1]} : vector<8x96xf32> to vector<8x32xf32>
    %169 = vector.extract_strided_slice %165 {offsets = [0, 32], sizes = [8, 32], strides = [1, 1]} : vector<8x96xf32> to vector<8x32xf32>
    %170 = vector.extract_strided_slice %165 {offsets = [0, 64], sizes = [8, 32], strides = [1, 1]} : vector<8x96xf32> to vector<8x32xf32>
    %171 = arith.mulf %169, %128 : vector<8x32xf32>
    %172 = arith.mulf %168, %167 : vector<8x32xf32>
    %173 = arith.addf %171, %172 : vector<8x32xf32>
    %174 = math.tanh %173 : vector<8x32xf32>
    %175 = arith.mulf %170, %174 : vector<8x32xf32>
    %176 = tpu.concatenate %175, %150 in 1 : vector<8x32xf32>, vector<8x32xf32> -> vector<8x64xf32>
    %177 = arith.truncf %176 : vector<8x64xf32> to vector<8x64xbf16>
    %cst_36 = arith.constant dense<0.000000e+00> : vector<8x128xf32>
    %178 = tpu.matmul %177, %4, %cst_36 {dimension_numbers = #tpu.dot_dimension_numbers<[1], [0], [0], [1], [0, 0, 1, 1], [], []>} : vector<8x64xbf16>, vector<64x128xbf16>, vector<8x128xf32> -> vector<8x128xf32>
    %179 = arith.addf %178, %8 : vector<8x128xf32>
    %180 = vector.extract_strided_slice %179 {offsets = [0, 0], sizes = [8, 96], strides = [1, 1]} : vector<8x128xf32> to vector<8x96xf32>
    %181 = arith.negf %180 : vector<8x96xf32>
    %182 = math.exp %181 : vector<8x96xf32>
    %cst_37 = arith.constant 1.000000e+00 : f32
    %183 = vector.broadcast %cst_37 : f32 to vector<8x96xf32>
    %184 = arith.addf %183, %182 : vector<8x96xf32>
    %185 = arith.divf %183, %184 : vector<8x96xf32>
    %186 = vector.extract_strided_slice %179 {offsets = [0, 96], sizes = [8, 32], strides = [1, 1]} : vector<8x128xf32> to vector<8x32xf32>
    %187 = math.tanh %186 : vector<8x32xf32>
    %188 = vector.extract_strided_slice %185 {offsets = [0, 0], sizes = [8, 32], strides = [1, 1]} : vector<8x96xf32> to vector<8x32xf32>
    %189 = vector.extract_strided_slice %185 {offsets = [0, 32], sizes = [8, 32], strides = [1, 1]} : vector<8x96xf32> to vector<8x32xf32>
    %190 = vector.extract_strided_slice %185 {offsets = [0, 64], sizes = [8, 32], strides = [1, 1]} : vector<8x96xf32> to vector<8x32xf32>
    %191 = arith.mulf %189, %148 : vector<8x32xf32>
    %192 = arith.mulf %188, %187 : vector<8x32xf32>
    %193 = arith.addf %191, %192 : vector<8x32xf32>
    %194 = math.tanh %193 : vector<8x32xf32>
    %195 = arith.mulf %190, %194 : vector<8x32xf32>
    %c4_i32 = arith.constant 4 : i32
    %196 = vector.broadcast %c4_i32 : i32 to vector<8x1xi32>
    %197 = arith.cmpi eq, %10, %196 : vector<8x1xi32>
    %198 = vector.shape_cast %197 : vector<8x1xi1> to vector<8x1xi1>
    %199 = vector.broadcast %198 : vector<8x1xi1> to vector<8x32xi1>
    %200 = arith.select %199, %195, %155 : vector<8x32xi1>, vector<8x32xf32>
    %201 = vector.extract_strided_slice %15 {offsets = [32, 0], sizes = [8, 128], strides = [1, 1]} : vector<64x128xf32> to vector<8x128xf32>
    %202 = arith.truncf %175 : vector<8x32xf32> to vector<8x32xbf16>
    %cst_38 = arith.constant dense<0.000000e+00> : vector<8x128xf32>
    %203 = tpu.matmul %202, %1, %cst_38 {dimension_numbers = #tpu.dot_dimension_numbers<[1], [0], [0], [1], [0, 0, 1, 1], [], []>} : vector<8x32xbf16>, vector<32x128xbf16>, vector<8x128xf32> -> vector<8x128xf32>
    %204 = arith.addf %201, %203 : vector<8x128xf32>
    %205 = vector.extract_strided_slice %204 {offsets = [0, 0], sizes = [8, 96], strides = [1, 1]} : vector<8x128xf32> to vector<8x96xf32>
    %206 = arith.negf %205 : vector<8x96xf32>
    %207 = math.exp %206 : vector<8x96xf32>
    %cst_39 = arith.constant 1.000000e+00 : f32
    %208 = vector.broadcast %cst_39 : f32 to vector<8x96xf32>
    %209 = arith.addf %208, %207 : vector<8x96xf32>
    %210 = arith.divf %208, %209 : vector<8x96xf32>
    %211 = vector.extract_strided_slice %204 {offsets = [0, 96], sizes = [8, 32], strides = [1, 1]} : vector<8x128xf32> to vector<8x32xf32>
    %212 = math.tanh %211 : vector<8x32xf32>
    %213 = vector.extract_strided_slice %210 {offsets = [0, 0], sizes = [8, 32], strides = [1, 1]} : vector<8x96xf32> to vector<8x32xf32>
    %214 = vector.extract_strided_slice %210 {offsets = [0, 32], sizes = [8, 32], strides = [1, 1]} : vector<8x96xf32> to vector<8x32xf32>
    %215 = vector.extract_strided_slice %210 {offsets = [0, 64], sizes = [8, 32], strides = [1, 1]} : vector<8x96xf32> to vector<8x32xf32>
    %216 = arith.mulf %214, %173 : vector<8x32xf32>
    %217 = arith.mulf %213, %212 : vector<8x32xf32>
    %218 = arith.addf %216, %217 : vector<8x32xf32>
    %219 = math.tanh %218 : vector<8x32xf32>
    %220 = arith.mulf %215, %219 : vector<8x32xf32>
    %221 = tpu.concatenate %220, %195 in 1 : vector<8x32xf32>, vector<8x32xf32> -> vector<8x64xf32>
    %222 = arith.truncf %221 : vector<8x64xf32> to vector<8x64xbf16>
    %cst_40 = arith.constant dense<0.000000e+00> : vector<8x128xf32>
    %223 = tpu.matmul %222, %4, %cst_40 {dimension_numbers = #tpu.dot_dimension_numbers<[1], [0], [0], [1], [0, 0, 1, 1], [], []>} : vector<8x64xbf16>, vector<64x128xbf16>, vector<8x128xf32> -> vector<8x128xf32>
    %224 = arith.addf %223, %8 : vector<8x128xf32>
    %225 = vector.extract_strided_slice %224 {offsets = [0, 0], sizes = [8, 96], strides = [1, 1]} : vector<8x128xf32> to vector<8x96xf32>
    %226 = arith.negf %225 : vector<8x96xf32>
    %227 = math.exp %226 : vector<8x96xf32>
    %cst_41 = arith.constant 1.000000e+00 : f32
    %228 = vector.broadcast %cst_41 : f32 to vector<8x96xf32>
    %229 = arith.addf %228, %227 : vector<8x96xf32>
    %230 = arith.divf %228, %229 : vector<8x96xf32>
    %231 = vector.extract_strided_slice %224 {offsets = [0, 96], sizes = [8, 32], strides = [1, 1]} : vector<8x128xf32> to vector<8x32xf32>
    %232 = math.tanh %231 : vector<8x32xf32>
    %233 = vector.extract_strided_slice %230 {offsets = [0, 0], sizes = [8, 32], strides = [1, 1]} : vector<8x96xf32> to vector<8x32xf32>
    %234 = vector.extract_strided_slice %230 {offsets = [0, 32], sizes = [8, 32], strides = [1, 1]} : vector<8x96xf32> to vector<8x32xf32>
    %235 = vector.extract_strided_slice %230 {offsets = [0, 64], sizes = [8, 32], strides = [1, 1]} : vector<8x96xf32> to vector<8x32xf32>
    %236 = arith.mulf %234, %193 : vector<8x32xf32>
    %237 = arith.mulf %233, %232 : vector<8x32xf32>
    %238 = arith.addf %236, %237 : vector<8x32xf32>
    %239 = math.tanh %238 : vector<8x32xf32>
    %240 = arith.mulf %235, %239 : vector<8x32xf32>
    %c5_i32 = arith.constant 5 : i32
    %241 = vector.broadcast %c5_i32 : i32 to vector<8x1xi32>
    %242 = arith.cmpi eq, %10, %241 : vector<8x1xi32>
    %243 = vector.shape_cast %242 : vector<8x1xi1> to vector<8x1xi1>
    %244 = vector.broadcast %243 : vector<8x1xi1> to vector<8x32xi1>
    %245 = arith.select %244, %240, %200 : vector<8x32xi1>, vector<8x32xf32>
    %246 = vector.extract_strided_slice %15 {offsets = [40, 0], sizes = [8, 128], strides = [1, 1]} : vector<64x128xf32> to vector<8x128xf32>
    %247 = arith.truncf %220 : vector<8x32xf32> to vector<8x32xbf16>
    %cst_42 = arith.constant dense<0.000000e+00> : vector<8x128xf32>
    %248 = tpu.matmul %247, %1, %cst_42 {dimension_numbers = #tpu.dot_dimension_numbers<[1], [0], [0], [1], [0, 0, 1, 1], [], []>} : vector<8x32xbf16>, vector<32x128xbf16>, vector<8x128xf32> -> vector<8x128xf32>
    %249 = arith.addf %246, %248 : vector<8x128xf32>
    %250 = vector.extract_strided_slice %249 {offsets = [0, 0], sizes = [8, 96], strides = [1, 1]} : vector<8x128xf32> to vector<8x96xf32>
    %251 = arith.negf %250 : vector<8x96xf32>
    %252 = math.exp %251 : vector<8x96xf32>
    %cst_43 = arith.constant 1.000000e+00 : f32
    %253 = vector.broadcast %cst_43 : f32 to vector<8x96xf32>
    %254 = arith.addf %253, %252 : vector<8x96xf32>
    %255 = arith.divf %253, %254 : vector<8x96xf32>
    %256 = vector.extract_strided_slice %249 {offsets = [0, 96], sizes = [8, 32], strides = [1, 1]} : vector<8x128xf32> to vector<8x32xf32>
    %257 = math.tanh %256 : vector<8x32xf32>
    %258 = vector.extract_strided_slice %255 {offsets = [0, 0], sizes = [8, 32], strides = [1, 1]} : vector<8x96xf32> to vector<8x32xf32>
    %259 = vector.extract_strided_slice %255 {offsets = [0, 32], sizes = [8, 32], strides = [1, 1]} : vector<8x96xf32> to vector<8x32xf32>
    %260 = vector.extract_strided_slice %255 {offsets = [0, 64], sizes = [8, 32], strides = [1, 1]} : vector<8x96xf32> to vector<8x32xf32>
    %261 = arith.mulf %259, %218 : vector<8x32xf32>
    %262 = arith.mulf %258, %257 : vector<8x32xf32>
    %263 = arith.addf %261, %262 : vector<8x32xf32>
    %264 = math.tanh %263 : vector<8x32xf32>
    %265 = arith.mulf %260, %264 : vector<8x32xf32>
    %266 = tpu.concatenate %265, %240 in 1 : vector<8x32xf32>, vector<8x32xf32> -> vector<8x64xf32>
    %267 = arith.truncf %266 : vector<8x64xf32> to vector<8x64xbf16>
    %cst_44 = arith.constant dense<0.000000e+00> : vector<8x128xf32>
    %268 = tpu.matmul %267, %4, %cst_44 {dimension_numbers = #tpu.dot_dimension_numbers<[1], [0], [0], [1], [0, 0, 1, 1], [], []>} : vector<8x64xbf16>, vector<64x128xbf16>, vector<8x128xf32> -> vector<8x128xf32>
    %269 = arith.addf %268, %8 : vector<8x128xf32>
    %270 = vector.extract_strided_slice %269 {offsets = [0, 0], sizes = [8, 96], strides = [1, 1]} : vector<8x128xf32> to vector<8x96xf32>
    %271 = arith.negf %270 : vector<8x96xf32>
    %272 = math.exp %271 : vector<8x96xf32>
    %cst_45 = arith.constant 1.000000e+00 : f32
    %273 = vector.broadcast %cst_45 : f32 to vector<8x96xf32>
    %274 = arith.addf %273, %272 : vector<8x96xf32>
    %275 = arith.divf %273, %274 : vector<8x96xf32>
    %276 = vector.extract_strided_slice %269 {offsets = [0, 96], sizes = [8, 32], strides = [1, 1]} : vector<8x128xf32> to vector<8x32xf32>
    %277 = math.tanh %276 : vector<8x32xf32>
    %278 = vector.extract_strided_slice %275 {offsets = [0, 0], sizes = [8, 32], strides = [1, 1]} : vector<8x96xf32> to vector<8x32xf32>
    %279 = vector.extract_strided_slice %275 {offsets = [0, 32], sizes = [8, 32], strides = [1, 1]} : vector<8x96xf32> to vector<8x32xf32>
    %280 = vector.extract_strided_slice %275 {offsets = [0, 64], sizes = [8, 32], strides = [1, 1]} : vector<8x96xf32> to vector<8x32xf32>
    %281 = arith.mulf %279, %238 : vector<8x32xf32>
    %282 = arith.mulf %278, %277 : vector<8x32xf32>
    %283 = arith.addf %281, %282 : vector<8x32xf32>
    %284 = math.tanh %283 : vector<8x32xf32>
    %285 = arith.mulf %280, %284 : vector<8x32xf32>
    %c6_i32 = arith.constant 6 : i32
    %286 = vector.broadcast %c6_i32 : i32 to vector<8x1xi32>
    %287 = arith.cmpi eq, %10, %286 : vector<8x1xi32>
    %288 = vector.shape_cast %287 : vector<8x1xi1> to vector<8x1xi1>
    %289 = vector.broadcast %288 : vector<8x1xi1> to vector<8x32xi1>
    %290 = arith.select %289, %285, %245 : vector<8x32xi1>, vector<8x32xf32>
    %291 = vector.extract_strided_slice %15 {offsets = [48, 0], sizes = [8, 128], strides = [1, 1]} : vector<64x128xf32> to vector<8x128xf32>
    %292 = arith.truncf %265 : vector<8x32xf32> to vector<8x32xbf16>
    %cst_46 = arith.constant dense<0.000000e+00> : vector<8x128xf32>
    %293 = tpu.matmul %292, %1, %cst_46 {dimension_numbers = #tpu.dot_dimension_numbers<[1], [0], [0], [1], [0, 0, 1, 1], [], []>} : vector<8x32xbf16>, vector<32x128xbf16>, vector<8x128xf32> -> vector<8x128xf32>
    %294 = arith.addf %291, %293 : vector<8x128xf32>
    %295 = vector.extract_strided_slice %294 {offsets = [0, 0], sizes = [8, 96], strides = [1, 1]} : vector<8x128xf32> to vector<8x96xf32>
    %296 = arith.negf %295 : vector<8x96xf32>
    %297 = math.exp %296 : vector<8x96xf32>
    %cst_47 = arith.constant 1.000000e+00 : f32
    %298 = vector.broadcast %cst_47 : f32 to vector<8x96xf32>
    %299 = arith.addf %298, %297 : vector<8x96xf32>
    %300 = arith.divf %298, %299 : vector<8x96xf32>
    %301 = vector.extract_strided_slice %294 {offsets = [0, 96], sizes = [8, 32], strides = [1, 1]} : vector<8x128xf32> to vector<8x32xf32>
    %302 = math.tanh %301 : vector<8x32xf32>
    %303 = vector.extract_strided_slice %300 {offsets = [0, 0], sizes = [8, 32], strides = [1, 1]} : vector<8x96xf32> to vector<8x32xf32>
    %304 = vector.extract_strided_slice %300 {offsets = [0, 32], sizes = [8, 32], strides = [1, 1]} : vector<8x96xf32> to vector<8x32xf32>
    %305 = vector.extract_strided_slice %300 {offsets = [0, 64], sizes = [8, 32], strides = [1, 1]} : vector<8x96xf32> to vector<8x32xf32>
    %306 = arith.mulf %304, %263 : vector<8x32xf32>
    %307 = arith.mulf %303, %302 : vector<8x32xf32>
    %308 = arith.addf %306, %307 : vector<8x32xf32>
    %309 = math.tanh %308 : vector<8x32xf32>
    %310 = arith.mulf %305, %309 : vector<8x32xf32>
    %311 = tpu.concatenate %310, %285 in 1 : vector<8x32xf32>, vector<8x32xf32> -> vector<8x64xf32>
    %312 = arith.truncf %311 : vector<8x64xf32> to vector<8x64xbf16>
    %cst_48 = arith.constant dense<0.000000e+00> : vector<8x128xf32>
    %313 = tpu.matmul %312, %4, %cst_48 {dimension_numbers = #tpu.dot_dimension_numbers<[1], [0], [0], [1], [0, 0, 1, 1], [], []>} : vector<8x64xbf16>, vector<64x128xbf16>, vector<8x128xf32> -> vector<8x128xf32>
    %314 = arith.addf %313, %8 : vector<8x128xf32>
    %315 = vector.extract_strided_slice %314 {offsets = [0, 0], sizes = [8, 96], strides = [1, 1]} : vector<8x128xf32> to vector<8x96xf32>
    %316 = arith.negf %315 : vector<8x96xf32>
    %317 = math.exp %316 : vector<8x96xf32>
    %cst_49 = arith.constant 1.000000e+00 : f32
    %318 = vector.broadcast %cst_49 : f32 to vector<8x96xf32>
    %319 = arith.addf %318, %317 : vector<8x96xf32>
    %320 = arith.divf %318, %319 : vector<8x96xf32>
    %321 = vector.extract_strided_slice %314 {offsets = [0, 96], sizes = [8, 32], strides = [1, 1]} : vector<8x128xf32> to vector<8x32xf32>
    %322 = math.tanh %321 : vector<8x32xf32>
    %323 = vector.extract_strided_slice %320 {offsets = [0, 0], sizes = [8, 32], strides = [1, 1]} : vector<8x96xf32> to vector<8x32xf32>
    %324 = vector.extract_strided_slice %320 {offsets = [0, 32], sizes = [8, 32], strides = [1, 1]} : vector<8x96xf32> to vector<8x32xf32>
    %325 = vector.extract_strided_slice %320 {offsets = [0, 64], sizes = [8, 32], strides = [1, 1]} : vector<8x96xf32> to vector<8x32xf32>
    %326 = arith.mulf %324, %283 : vector<8x32xf32>
    %327 = arith.mulf %323, %322 : vector<8x32xf32>
    %328 = arith.addf %326, %327 : vector<8x32xf32>
    %329 = math.tanh %328 : vector<8x32xf32>
    %330 = arith.mulf %325, %329 : vector<8x32xf32>
    %c7_i32 = arith.constant 7 : i32
    %331 = vector.broadcast %c7_i32 : i32 to vector<8x1xi32>
    %332 = arith.cmpi eq, %10, %331 : vector<8x1xi32>
    %333 = vector.shape_cast %332 : vector<8x1xi1> to vector<8x1xi1>
    %334 = vector.broadcast %333 : vector<8x1xi1> to vector<8x32xi1>
    %335 = arith.select %334, %330, %290 : vector<8x32xi1>, vector<8x32xf32>
    %336 = vector.extract_strided_slice %15 {offsets = [56, 0], sizes = [8, 128], strides = [1, 1]} : vector<64x128xf32> to vector<8x128xf32>
    %337 = arith.truncf %310 : vector<8x32xf32> to vector<8x32xbf16>
    %cst_50 = arith.constant dense<0.000000e+00> : vector<8x128xf32>
    %338 = tpu.matmul %337, %1, %cst_50 {dimension_numbers = #tpu.dot_dimension_numbers<[1], [0], [0], [1], [0, 0, 1, 1], [], []>} : vector<8x32xbf16>, vector<32x128xbf16>, vector<8x128xf32> -> vector<8x128xf32>
    %339 = arith.addf %336, %338 : vector<8x128xf32>
    %340 = vector.extract_strided_slice %339 {offsets = [0, 0], sizes = [8, 96], strides = [1, 1]} : vector<8x128xf32> to vector<8x96xf32>
    %341 = arith.negf %340 : vector<8x96xf32>
    %342 = math.exp %341 : vector<8x96xf32>
    %cst_51 = arith.constant 1.000000e+00 : f32
    %343 = vector.broadcast %cst_51 : f32 to vector<8x96xf32>
    %344 = arith.addf %343, %342 : vector<8x96xf32>
    %345 = arith.divf %343, %344 : vector<8x96xf32>
    %346 = vector.extract_strided_slice %339 {offsets = [0, 96], sizes = [8, 32], strides = [1, 1]} : vector<8x128xf32> to vector<8x32xf32>
    %347 = math.tanh %346 : vector<8x32xf32>
    %348 = vector.extract_strided_slice %345 {offsets = [0, 0], sizes = [8, 32], strides = [1, 1]} : vector<8x96xf32> to vector<8x32xf32>
    %349 = vector.extract_strided_slice %345 {offsets = [0, 32], sizes = [8, 32], strides = [1, 1]} : vector<8x96xf32> to vector<8x32xf32>
    %350 = vector.extract_strided_slice %345 {offsets = [0, 64], sizes = [8, 32], strides = [1, 1]} : vector<8x96xf32> to vector<8x32xf32>
    %351 = arith.mulf %349, %308 : vector<8x32xf32>
    %352 = arith.mulf %348, %347 : vector<8x32xf32>
    %353 = arith.addf %351, %352 : vector<8x32xf32>
    %354 = math.tanh %353 : vector<8x32xf32>
    %355 = arith.mulf %350, %354 : vector<8x32xf32>
    %356 = tpu.concatenate %355, %330 in 1 : vector<8x32xf32>, vector<8x32xf32> -> vector<8x64xf32>
    %357 = arith.truncf %356 : vector<8x64xf32> to vector<8x64xbf16>
    %cst_52 = arith.constant dense<0.000000e+00> : vector<8x128xf32>
    %358 = tpu.matmul %357, %4, %cst_52 {dimension_numbers = #tpu.dot_dimension_numbers<[1], [0], [0], [1], [0, 0, 1, 1], [], []>} : vector<8x64xbf16>, vector<64x128xbf16>, vector<8x128xf32> -> vector<8x128xf32>
    %359 = arith.addf %358, %8 : vector<8x128xf32>
    %360 = vector.extract_strided_slice %359 {offsets = [0, 0], sizes = [8, 96], strides = [1, 1]} : vector<8x128xf32> to vector<8x96xf32>
    %361 = arith.negf %360 : vector<8x96xf32>
    %362 = math.exp %361 : vector<8x96xf32>
    %cst_53 = arith.constant 1.000000e+00 : f32
    %363 = vector.broadcast %cst_53 : f32 to vector<8x96xf32>
    %364 = arith.addf %363, %362 : vector<8x96xf32>
    %365 = arith.divf %363, %364 : vector<8x96xf32>
    %366 = vector.extract_strided_slice %359 {offsets = [0, 96], sizes = [8, 32], strides = [1, 1]} : vector<8x128xf32> to vector<8x32xf32>
    %367 = math.tanh %366 : vector<8x32xf32>
    %368 = vector.extract_strided_slice %365 {offsets = [0, 0], sizes = [8, 32], strides = [1, 1]} : vector<8x96xf32> to vector<8x32xf32>
    %369 = vector.extract_strided_slice %365 {offsets = [0, 32], sizes = [8, 32], strides = [1, 1]} : vector<8x96xf32> to vector<8x32xf32>
    %370 = vector.extract_strided_slice %365 {offsets = [0, 64], sizes = [8, 32], strides = [1, 1]} : vector<8x96xf32> to vector<8x32xf32>
    %371 = arith.mulf %369, %328 : vector<8x32xf32>
    %372 = arith.mulf %368, %367 : vector<8x32xf32>
    %373 = arith.addf %371, %372 : vector<8x32xf32>
    %374 = math.tanh %373 : vector<8x32xf32>
    %375 = arith.mulf %370, %374 : vector<8x32xf32>
    %c8_i32 = arith.constant 8 : i32
    %376 = vector.broadcast %c8_i32 : i32 to vector<8x1xi32>
    %377 = arith.cmpi eq, %10, %376 : vector<8x1xi32>
    %378 = vector.shape_cast %377 : vector<8x1xi1> to vector<8x1xi1>
    %379 = vector.broadcast %378 : vector<8x1xi1> to vector<8x32xi1>
    %380 = arith.select %379, %375, %335 : vector<8x32xi1>, vector<8x32xf32>
    %c0_54 = arith.constant 0 : index
    %c0_55 = arith.constant 0 : index
    %381 = vector.load %arg8[%c0_54, %c0_55] : memref<8x32xf32, #tpu.memory_space<vmem>>, vector<8x32xf32>
    tpu.vector_store %arg8[%c0_54, %c0_55], %380 {strides = array<i32>} : memref<8x32xf32, #tpu.memory_space<vmem>>, vector<8x32xf32>,
    return
  }
  func.func @transform_0(%arg0: i32) -> (i32, i32, i32) {
    %c0_i32 = arith.constant 0 : i32
    %c0_i32_0 = arith.constant 0 : i32
    %c0_i32_1 = arith.constant 0 : i32
    return %arg0, %c0_i32, %c0_i32_0 : i32, i32, i32
  }
  func.func @transform_1(%arg0: i32) -> (i32, i32, i32) {
    %c0_i32 = arith.constant 0 : i32
    %c0_i32_0 = arith.constant 0 : i32
    %c0_i32_1 = arith.constant 0 : i32
    return %arg0, %c0_i32, %c0_i32_0 : i32, i32, i32
  }
  func.func @transform_2(%arg0: i32) -> (i32, i32) {
    %c0_i32 = arith.constant 0 : i32
    %c0_i32_0 = arith.constant 0 : i32
    %c0_i32_1 = arith.constant 0 : i32
    return %c0_i32, %c0_i32_0 : i32, i32
  }
  func.func @transform_3(%arg0: i32) -> (i32, i32) {
    %c0_i32 = arith.constant 0 : i32
    %c0_i32_0 = arith.constant 0 : i32
    %c0_i32_1 = arith.constant 0 : i32
    return %c0_i32, %c0_i32_0 : i32, i32
  }
  func.func @transform_4(%arg0: i32) -> (i32, i32) {
    %c0_i32 = arith.constant 0 : i32
    %c0_i32_0 = arith.constant 0 : i32
    %c0_i32_1 = arith.constant 0 : i32
    return %c0_i32, %c0_i32_0 : i32, i32
  }
  func.func @transform_5(%arg0: i32) -> (i32, i32, i32) {
    %c0_i32 = arith.constant 0 : i32
    %c0_i32_0 = arith.constant 0 : i32
    %c0_i32_1 = arith.constant 0 : i32
    %c0_i32_2 = arith.constant 0 : i32
    return %c0_i32, %c0_i32_0, %c0_i32_1 : i32, i32, i32
  }
  func.func @transform_6(%arg0: i32) -> (i32, i32, i32) {
    %c0_i32 = arith.constant 0 : i32
    %c0_i32_0 = arith.constant 0 : i32
    %c0_i32_1 = arith.constant 0 : i32
    %c0_i32_2 = arith.constant 0 : i32
    return %c0_i32, %c0_i32_0, %c0_i32_1 : i32, i32, i32
  }
  func.func @transform_7(%arg0: i32) -> (i32, i32) {
    %c0_i32 = arith.constant 0 : i32
    %c0_i32_0 = arith.constant 0 : i32
    return %arg0, %c0_i32 : i32, i32
  }
}

</mosaic_0001>

<llo_original>
// kernel: tpu_custom_call.1
$region0: #{tpu_custom_call.1}
  #allocation0 [shape = 'u32[]', space=smem, size = 0x4, offset = 0x4, fixed_abs, tag = 'smem constant byte address 0x4 - core index']
  #allocation1 [shape = 'u32[72,128]{1,0:T(1,128)}', space=vmem, size = 0x9000, scoped, tag = 'internal scratch']
  %s0 = inlined_call_operand.vmem [shape: bf16[1,64,4], index: 0, kind: input, shape index: {}]
  %s1 = inlined_call_operand.vmem [shape: s32[1,8,1], index: 1, kind: input, shape index: {}]
  %s2 = inlined_call_operand.vmem [shape: bf16[4,128], index: 2, kind: input, shape index: {}]
  %s3 = inlined_call_operand.hbm [shape: bf16[32,128], index: 3, kind: input, shape index: {}]
  %s4 = inlined_call_operand.vmem [shape: f32[1,128], index: 4, kind: input, shape index: {}]
  %s5 = inlined_call_operand.vmem [shape: bf16[1,64,128], index: 5, kind: input, shape index: {}]
  %s6 = inlined_call_operand.vmem [shape: f32[1,1,128], index: 6, kind: input, shape index: {}]
  %s7 = inlined_call_operand.hbm [shape: f32[8,32], index: 7, kind: output, shape index: {}]
  %s8 = sld [smem:[#allocation0]]
  $region42: #{tpu_custom_call.1} parent=0
    _
  %s10 = ssub.s32 1, %s8
  %s11 = scalar_select 0, %s10, %s8
  $region1: #{tpu_custom_call.1} parent=0
    #allocation2 [shape = 'u8[8192]{0}', space=vmem, size = 0x2000, scoped, tag = 'input window, operand 3, single buffered']
    #allocation3 [shape = 's32[1]{0}', space=sflag, size = 0x4, scoped, tag = 'scoped memory for tpu_custom_call.1']
    #allocation4 [shape = 's32[1]{0}', space=sflag, size = 0x4, scoped, tag = 'scoped memory for tpu_custom_call.1']
    #allocation5 [shape = 'u8[4096]{0}', space=vmem, size = 0x1000, scoped, tag = 'output window, operand 0, single buffered']
    %12 = vsyncpa [#allocation3], 0
    %13 = vsyncpa [#allocation4], 0
    // Predicated region
    $region2: #{tpu_custom_call.1} parent=1 // pred_check
      _
    $region3: #{tpu_custom_call.1} parent=1 // pred_check_branch
      %15 = sbr.rel (0) target = $region5
    $region4: #{tpu_custom_call.1} parent=1 // pred_region
      _
    $region5: #{tpu_custom_call.1} parent=1 // pred_fallthru
      _
    // Predicated region
    $region6: #{tpu_custom_call.1} parent=1 // pred_check
      _
    $region7: #{tpu_custom_call.1} parent=1 // pred_check_branch
      %17 = sbr.rel (0) target = $region9
    $region8: #{tpu_custom_call.1} parent=1 // pred_region
      _
    $region9: #{tpu_custom_call.1} parent=1 // pred_fallthru
      _
    // Predicated region
    $region10: #{tpu_custom_call.1} parent=1 // pred_check
      _
    $region11: #{tpu_custom_call.1} parent=1 // pred_check_branch
      %19 = sbr.rel (0) target = $region13
    $region12: #{tpu_custom_call.1} parent=1 // pred_region
      _
    $region13: #{tpu_custom_call.1} parent=1 // pred_fallthru
      _
    // Predicated region
    $region14: #{tpu_custom_call.1} parent=1 // pred_check
      _
    $region15: #{tpu_custom_call.1} parent=1 // pred_check_branch
      %21 = sbr.rel (0) target = $region17
    $region16: #{tpu_custom_call.1} parent=1 // pred_region
      %23 = vsyncadd [#allocation3], 0
      %s24 = sshll.u32 %s3, 4
      %s25 = int_to_ptr.hbm [resolvable:$true] %s24
      %s26 = sshll.u32 [#allocation2], 4
      %s27 = int_to_ptr.vmem [resolvable:$true] %s26
      %32 = dma.hbm_to_vmem [thread:$0]  %s25, 256, %s27, [#allocation3], 64, 64, 4
    $region17: #{tpu_custom_call.1} parent=1 // pred_fallthru
      _
    // Predicated region
    $region18: #{tpu_custom_call.1} parent=1 // pred_check
      _
    $region19: #{tpu_custom_call.1} parent=1 // pred_check_branch
      %34 = sbr.rel (0) target = $region21
    $region20: #{tpu_custom_call.1} parent=1 // pred_region
      _
    $region21: #{tpu_custom_call.1} parent=1 // pred_fallthru
      _
    // Predicated region
    $region22: #{tpu_custom_call.1} parent=1 // pred_check
      _
    $region23: #{tpu_custom_call.1} parent=1 // pred_check_branch
      %36 = sbr.rel (0) target = $region25
    $region24: #{tpu_custom_call.1} parent=1 // pred_region
      _
    $region25: #{tpu_custom_call.1} parent=1 // pred_fallthru
      _
    // Predicated region
    $region26: #{tpu_custom_call.1} parent=1 // pred_check
      _
    $region27: #{tpu_custom_call.1} parent=1 // pred_check_branch
      %38 = sbr.rel (0) target = $region29
    $region28: #{tpu_custom_call.1} parent=1 // pred_region
      _
    $region29: #{tpu_custom_call.1} parent=1 // pred_fallthru
      _
    // Predicated region
    $region30: #{tpu_custom_call.1} parent=1 // pred_check
      _
    $region31: #{tpu_custom_call.1} parent=1 // pred_check_branch
      %40 = sbr.rel (0) target = $region33
    $region32: #{tpu_custom_call.1} parent=1 // pred_region
      %42 = dma.done [#allocation3], 256
    $region33: #{tpu_custom_call.1} parent=1 // pred_fallthru
      _
    %v44 = vld [vmem:[%s2] sm:$0x3]
    %v45 = vld [vmem:[#allocation2] sm:$0xf]
    %v46 = vld [vmem:[#allocation2 + $0x4] sm:$0xf]
    %v47 = vld [vmem:[#allocation2 + $0x8] sm:$0xf]
    %v48 = vld [vmem:[#allocation2 + $0xc] sm:$0xf]
    %v49 = vld [vmem:[%s4] sm:$0x1]
    %v50 = vld [vmem:[%s5] sm:$0xf]
    %v51 = vld [vmem:[%s5 + $0x4] sm:$0xf]
    %v52 = vld [vmem:[%s5 + $0x8] sm:$0xf]
    %v53 = vld [vmem:[%s5 + $0xc] sm:$0xf]
    %v54 = vld [vmem:[%s5 + $0x10] sm:$0xf]
    %v55 = vld [vmem:[%s5 + $0x14] sm:$0xf]
    %v56 = vld [vmem:[%s5 + $0x18] sm:$0xf]
    %v57 = vld [vmem:[%s5 + $0x1c] sm:$0xf]
    %v58 = vld [vmem:[%s6] sm:$0x1]
    %v60 = vperm.slane %v58, 0
    %v62 = vld [vmem:[%s1] sm:$0xff]
    %v63 = vld [vmem:[%s0] sm:$0xf]
    %v64 = vld [vmem:[%s0 + $0x4] sm:$0xf]
    %v65 = vld [vmem:[%s0 + $0x8] sm:$0xf]
    %v66 = vld [vmem:[%s0 + $0xc] sm:$0xf]
    %v67 = vld [vmem:[%s0 + $0x10] sm:$0xf]
    %v68 = vld [vmem:[%s0 + $0x14] sm:$0xf]
    %v69 = vld [vmem:[%s0 + $0x18] sm:$0xf]
    %v70 = vld [vmem:[%s0 + $0x1c] sm:$0xf]
    %v72 = vperm.slane %v49, 0
    %v82 = vunpack.c.l.b16 %v63
    %v83 = vunpack.c.l.b16 %v64
    %v84 = vunpack.c.l.b16 %v65
    %v85 = vunpack.c.l.b16 %v66
    %v86 = vunpack.c.l.b16 %v67
    %v87 = vunpack.c.l.b16 %v68
    %v88 = vunpack.c.l.b16 %v69
    %v89 = vunpack.c.l.b16 %v70
    %v90 = vpack.c.b16 %v83, %v82
    %v91 = vpack.c.b16 %v85, %v84
    %v92 = vpack.c.b16 %v87, %v86
    %v93 = vpack.c.b16 %v89, %v88
    %vm94 = vcmask 31744
    %v96 = vsel %vm94, %v90, 0
    %v99 = vsel %vm94, %v91, 0
    %v102 = vsel %vm94, %v92, 0
    %v105 = vsel %vm94, %v93, 0
    %vm107 = vcmask 1041408
    %v109 = vsel %vm107, %v44, 0
    %111 = vmatpush.bf16.msra.mxu0 0
    %112 = vmatpush.bf16.msra.mxu0 0
    %113 = vmatpush.bf16.msra.mxu0 0
    %114 = vmatpush.bf16.msra.mxu0 0
    %115 = vmatpush.bf16.msra.mxu0 0
    %116 = vmatpush.bf16.msra.mxu0 0
    %117 = vmatpush.bf16.msra.mxu0 0
    %118 = vmatpush.bf16.msra.mxu0 %v109
    %119 = vmatmul.bf16.gmra.mxu0 %v96
    %v120 = vpop.f32.mrf.mxu0
    %v121 = vadd.f32 %v72, %v120
    %v122 = vpop.f32.mrf.mxu0
    %v123 = vadd.f32 %v72, %v122
    %124 = vmatmul.bf16.gmra.mxu0 %v99
    %v125 = vpop.f32.mrf.mxu0
    %v126 = vadd.f32 %v72, %v125
    %v127 = vpop.f32.mrf.mxu0
    %v128 = vadd.f32 %v72, %v127
    %129 = vmatmul.bf16.gmra.mxu0 %v102
    %v130 = vpop.f32.mrf.mxu0
    %v131 = vadd.f32 %v72, %v130
    %v132 = vpop.f32.mrf.mxu0
    %v133 = vadd.f32 %v72, %v132
    %134 = vmatmul.bf16.gmra.mxu0 %v105
    %v135 = vpop.f32.mrf.mxu0
    %v136 = vadd.f32 %v72, %v135
    %v137 = vpop.f32.mrf.mxu0
    %v138 = vadd.f32 %v72, %v137
    %139 = vdwg.mxu0
    %v144 = vunpack.c.l.b16 %v45
    %v145 = vunpack.c.l.b16 %v46
    %v146 = vunpack.c.l.b16 %v47
    %v147 = vunpack.c.l.b16 %v48
    %v148 = vpack.c.b16 %v145, %v144
    %v149 = vpack.c.b16 %v147, %v146
    %vm152 = vcmask 261120
    %v154 = vsel %vm152, 0, 0
    %156 = vmatpush.bf16.msra.mxu0 0
    %157 = vmatpush.bf16.msra.mxu0 0
    %158 = vmatpush.bf16.msra.mxu0 0
    %159 = vmatpush.bf16.msra.mxu0 0
    %160 = vmatpush.bf16.msra.mxu0 0
    %161 = vmatpush.bf16.msra.mxu0 0
    %162 = vmatpush.bf16.msra.mxu0 %v149
    %163 = vmatpush.bf16.msra.mxu0 %v148
    %164 = vmatmul.bf16.gmra.mxu0 %v154
    %v165 = vpop.f32.mrf.mxu0
    %v166 = vadd.f32 0.0, %v165
    %v167 = vpop.f32.mrf.mxu0
    %168 = vdwg.mxu0
    %v169 = vadd.f32 %v121, %v166
    %v170 = vxor.u32 %v169, 2147483648
    %v171 = vmul.f32 %v170, 1.442695
    %v172 = vpow.pop %v171
    %v173 = vadd.f32 %v172, 1.0
    %v174 = vrcp.pop %v173
    %v175 = vmul.f32 %v173, %v174
    %v176 = vsub.f32 1.0, %v175
    %v177 = vmul.f32 %v174, %v176
    %v178 = vadd.f32 %v174, %v177
    %vm179 = vweird.f32 %v173
    %vm180 = vweird.f32 %v174
    %vm181 = vmor %vm179, %vm180
    %v182 = vsel %vm181, %v174, %v178
    %v183 = vand.u32 2147483647, %v173
    %vm184 = vcmp.eq.f32.partialorder %v183, 8.507059e+37
    %v185 = vand.u32 %v173, 2147483648
    %v186 = vor.u32 1.1754944e-38, %v185
    %v187 = vsel %vm184, %v186, %v182
    %v188 = vmul.f32 1.0, %v187
    %v189 = vtanh.pop %v169
    %v190 = vmul.f32 %v188, 0.0
    %192 = vrot.lane.b32.xlu0 %v189, 32
    %v193 = vpop.permute.xlu0 %192
    %v195 = vmul.f32 %v188, %v193
    %197 = vrot.lane.b32.xlu0 %v195, 32
    %v198 = vpop.permute.xlu0 %197
    %v200 = vadd.f32 %v190, %v198
    %v201 = vtanh.pop %v200
    %203 = vrot.lane.b32.xlu0 %v201, 32
    %v204 = vpop.permute.xlu0 %203
    %v206 = vmul.f32 %v188, %v204
    %208 = vrot.lane.b32.xlu0 %v206, 64
    %v209 = vpop.permute.xlu0 %208
    %v211 = vsel %vm152, %v209, 0.0
    %v212 = vpack.c.bf16 %v211, %v211
    %v221 = vunpack.c.l.b16 %v50
    %v222 = vunpack.c.l.b16 %v51
    %v223 = vunpack.c.l.b16 %v52
    %v224 = vunpack.c.l.b16 %v53
    %v225 = vunpack.c.l.b16 %v54
    %v226 = vunpack.c.l.b16 %v55
    %v227 = vunpack.c.l.b16 %v56
    %v228 = vunpack.c.l.b16 %v57
    %v229 = vpack.c.b16 %v222, %v221
    %v230 = vpack.c.b16 %v224, %v223
    %v231 = vpack.c.b16 %v226, %v225
    %v232 = vpack.c.b16 %v228, %v227
    %vm237 = vcmask 523264
    %v239 = vsel %vm237, %v212, 0
    %241 = vmatpush.bf16.msra.mxu0 0
    %242 = vmatpush.bf16.msra.mxu0 0
    %243 = vmatpush.bf16.msra.mxu0 0
    %244 = vmatpush.bf16.msra.mxu0 0
    %245 = vmatpush.bf16.msra.mxu0 %v232
    %246 = vmatpush.bf16.msra.mxu0 %v231
    %247 = vmatpush.bf16.msra.mxu0 %v230
    %248 = vmatpush.bf16.msra.mxu0 %v229
    %249 = vmatmul.bf16.gmra.mxu0 %v239
    %v250 = vpop.f32.mrf.mxu0
    %v251 = vadd.f32 %v60, %v250
    %v252 = vpop.f32.mrf.mxu0
    %253 = vdwg.mxu0
    %v254 = vxor.u32 %v251, 2147483648
    %v255 = vmul.f32 %v254, 1.442695
    %v256 = vpow.pop %v255
    %v257 = vadd.f32 %v256, 1.0
    %v258 = vrcp.pop %v257
    %v259 = vmul.f32 %v257, %v258
    %v260 = vsub.f32 1.0, %v259
    %v261 = vmul.f32 %v258, %v260
    %v262 = vadd.f32 %v258, %v261
    %vm263 = vweird.f32 %v257
    %vm264 = vweird.f32 %v258
    %vm265 = vmor %vm263, %vm264
    %v266 = vsel %vm265, %v258, %v262
    %v267 = vand.u32 2147483647, %v257
    %vm268 = vcmp.eq.f32.partialorder %v267, 8.507059e+37
    %v269 = vand.u32 %v257, 2147483648
    %v270 = vor.u32 1.1754944e-38, %v269
    %v271 = vsel %vm268, %v270, %v266
    %v272 = vmul.f32 1.0, %v271
    %v273 = vtanh.pop %v251
    %v274 = vmul.f32 %v272, 0.0
    %276 = vrot.lane.b32.xlu0 %v273, 32
    %v277 = vpop.permute.xlu0 %276
    %v279 = vmul.f32 %v272, %v277
    %281 = vrot.lane.b32.xlu0 %v279, 32
    %v282 = vpop.permute.xlu0 %281
    %v284 = vadd.f32 %v274, %v282
    %v285 = vtanh.pop %v284
    %287 = vrot.lane.b32.xlu0 %v285, 32
    %v288 = vpop.permute.xlu0 %287
    %v290 = vmul.f32 %v272, %v288
    %vm291 = vcmp.eq.s32.totalorder %v62, 1
    %v292 = vsel %vm291, 1, 0
    %293 = vset.pattern.permute.xlu0 0
    %294 = vperm.xlu0 %293, %v292
    %v295 = vpop.permute.xlu0 %294
    %vm296 = vcmp.eq.s32.totalorder %v295, 1
    %v297 = vsel %vm296, %v290, 0.0
    %v298 = vpack.c.bf16 %v206, %v206
    %300 = vrot.lane.b32.xlu0 %v298, 64
    %v301 = vpop.permute.xlu0 %300
    %v303 = vsel %vm152, %v301, 0
    %305 = vmatpush.bf16.msra.mxu0 0
    %306 = vmatpush.bf16.msra.mxu0 0
    %307 = vmatpush.bf16.msra.mxu0 0
    %308 = vmatpush.bf16.msra.mxu0 0
    %309 = vmatpush.bf16.msra.mxu0 0
    %310 = vmatpush.bf16.msra.mxu0 0
    %311 = vmatpush.bf16.msra.mxu0 %v149
    %312 = vmatpush.bf16.msra.mxu0 %v148
    %313 = vmatmul.bf16.gmra.mxu0 %v303
    %v314 = vpop.f32.mrf.mxu0
    %v315 = vadd.f32 0.0, %v314
    %v316 = vpop.f32.mrf.mxu0
    %317 = vdwg.mxu0
    %v318 = vadd.f32 %v123, %v315
    %v319 = vxor.u32 %v318, 2147483648
    %v320 = vmul.f32 %v319, 1.442695
    %v321 = vpow.pop %v320
    %v322 = vadd.f32 %v321, 1.0
    %v323 = vrcp.pop %v322
    %v324 = vmul.f32 %v322, %v323
    %v325 = vsub.f32 1.0, %v324
    %v326 = vmul.f32 %v323, %v325
    %v327 = vadd.f32 %v323, %v326
    %vm328 = vweird.f32 %v322
    %vm329 = vweird.f32 %v323
    %vm330 = vmor %vm328, %vm329
    %v331 = vsel %vm330, %v323, %v327
    %v332 = vand.u32 2147483647, %v322
    %vm333 = vcmp.eq.f32.partialorder %v332, 8.507059e+37
    %v334 = vand.u32 %v322, 2147483648
    %v335 = vor.u32 1.1754944e-38, %v334
    %v336 = vsel %vm333, %v335, %v331
    %v337 = vmul.f32 1.0, %v336
    %v338 = vtanh.pop %v318
    %v339 = vmul.f32 %v337, %v200
    %341 = vrot.lane.b32.xlu0 %v338, 32
    %v342 = vpop.permute.xlu0 %341
    %v344 = vmul.f32 %v337, %v342
    %346 = vrot.lane.b32.xlu0 %v344, 32
    %v347 = vpop.permute.xlu0 %346
    %v349 = vadd.f32 %v339, %v347
    %v350 = vtanh.pop %v349
    %352 = vrot.lane.b32.xlu0 %v350, 32
    %v353 = vpop.permute.xlu0 %352
    %v355 = vmul.f32 %v337, %v353
    %357 = vrot.lane.b32.xlu0 %v355, 64
    %v358 = vpop.permute.xlu0 %357
    %361 = vrot.lane.b32.xlu0 %v290, 96
    %v362 = vpop.permute.xlu0 %361
    %v364 = vsel %vm152, %v358, %v362
    %v365 = vpack.c.bf16 %v364, %v364
    %v367 = vsel %vm237, %v365, 0
    %369 = vmatpush.bf16.msra.mxu0 0
    %370 = vmatpush.bf16.msra.mxu0 0
    %371 = vmatpush.bf16.msra.mxu0 0
    %372 = vmatpush.bf16.msra.mxu0 0
    %373 = vmatpush.bf16.msra.mxu0 %v232
    %374 = vmatpush.bf16.msra.mxu0 %v231
    %375 = vmatpush.bf16.msra.mxu0 %v230
    %376 = vmatpush.bf16.msra.mxu0 %v229
    %377 = vmatmul.bf16.gmra.mxu0 %v367
    %v378 = vpop.f32.mrf.mxu0
    %v379 = vadd.f32 %v60, %v378
    %v380 = vpop.f32.mrf.mxu0
    %381 = vdwg.mxu0
    %v382 = vxor.u32 %v379, 2147483648
    %v383 = vmul.f32 %v382, 1.442695
    %v384 = vpow.pop %v383
    %v385 = vadd.f32 %v384, 1.0
    %v386 = vrcp.pop %v385
    %v387 = vmul.f32 %v385, %v386
    %v388 = vsub.f32 1.0, %v387
    %v389 = vmul.f32 %v386, %v388
    %v390 = vadd.f32 %v386, %v389
    %vm391 = vweird.f32 %v385
    %vm392 = vweird.f32 %v386
    %vm393 = vmor %vm391, %vm392
    %v394 = vsel %vm393, %v386, %v390
    %v395 = vand.u32 2147483647, %v385
    %vm396 = vcmp.eq.f32.partialorder %v395, 8.507059e+37
    %v397 = vand.u32 %v385, 2147483648
    %v398 = vor.u32 1.1754944e-38, %v397
    %v399 = vsel %vm396, %v398, %v394
    %v400 = vmul.f32 1.0, %v399
    %v401 = vtanh.pop %v379
    %v402 = vmul.f32 %v400, %v284
    %404 = vrot.lane.b32.xlu0 %v401, 32
    %v405 = vpop.permute.xlu0 %404
    %v407 = vmul.f32 %v400, %v405
    %409 = vrot.lane.b32.xlu0 %v407, 32
    %v410 = vpop.permute.xlu0 %409
    %v412 = vadd.f32 %v402, %v410
    %v413 = vtanh.pop %v412
    %415 = vrot.lane.b32.xlu0 %v413, 32
    %v416 = vpop.permute.xlu0 %415
    %v418 = vmul.f32 %v400, %v416
    %vm419 = vcmp.eq.s32.totalorder %v62, 2
    %v420 = vsel %vm419, 1, 0
    %421 = vset.pattern.permute.xlu0 0
    %422 = vperm.xlu0 %421, %v420
    %v423 = vpop.permute.xlu0 %422
    %vm424 = vcmp.eq.s32.totalorder %v423, 1
    %v425 = vsel %vm424, %v418, %v297
    %v426 = vpack.c.bf16 %v355, %v355
    %428 = vrot.lane.b32.xlu0 %v426, 64
    %v429 = vpop.permute.xlu0 %428
    %v431 = vsel %vm152, %v429, 0
    %433 = vmatpush.bf16.msra.mxu0 0
    %434 = vmatpush.bf16.msra.mxu0 0
    %435 = vmatpush.bf16.msra.mxu0 0
    %436 = vmatpush.bf16.msra.mxu0 0
    %437 = vmatpush.bf16.msra.mxu0 0
    %438 = vmatpush.bf16.msra.mxu0 0
    %439 = vmatpush.bf16.msra.mxu0 %v149
    %440 = vmatpush.bf16.msra.mxu0 %v148
    %441 = vmatmul.bf16.gmra.mxu0 %v431
    %v442 = vpop.f32.mrf.mxu0
    %v443 = vadd.f32 0.0, %v442
    %v444 = vpop.f32.mrf.mxu0
    %445 = vdwg.mxu0
    %v446 = vadd.f32 %v126, %v443
    %v447 = vxor.u32 %v446, 2147483648
    %v448 = vmul.f32 %v447, 1.442695
    %v449 = vpow.pop %v448
    %v450 = vadd.f32 %v449, 1.0
    %v451 = vrcp.pop %v450
    %v452 = vmul.f32 %v450, %v451
    %v453 = vsub.f32 1.0, %v452
    %v454 = vmul.f32 %v451, %v453
    %v455 = vadd.f32 %v451, %v454
    %vm456 = vweird.f32 %v450
    %vm457 = vweird.f32 %v451
    %vm458 = vmor %vm456, %vm457
    %v459 = vsel %vm458, %v451, %v455
    %v460 = vand.u32 2147483647, %v450
    %vm461 = vcmp.eq.f32.partialorder %v460, 8.507059e+37
    %v462 = vand.u32 %v450, 2147483648
    %v463 = vor.u32 1.1754944e-38, %v462
    %v464 = vsel %vm461, %v463, %v459
    %v465 = vmul.f32 1.0, %v464
    %v466 = vtanh.pop %v446
    %v467 = vmul.f32 %v465, %v349
    %469 = vrot.lane.b32.xlu0 %v466, 32
    %v470 = vpop.permute.xlu0 %469
    %v472 = vmul.f32 %v465, %v470
    %474 = vrot.lane.b32.xlu0 %v472, 32
    %v475 = vpop.permute.xlu0 %474
    %v477 = vadd.f32 %v467, %v475
    %v478 = vtanh.pop %v477
    %480 = vrot.lane.b32.xlu0 %v478, 32
    %v481 = vpop.permute.xlu0 %480
    %v483 = vmul.f32 %v465, %v481
    %485 = vrot.lane.b32.xlu0 %v483, 64
    %v486 = vpop.permute.xlu0 %485
    %489 = vrot.lane.b32.xlu0 %v418, 96
    %v490 = vpop.permute.xlu0 %489
    %v492 = vsel %vm152, %v486, %v490
    %v493 = vpack.c.bf16 %v492, %v492
    %v495 = vsel %vm237, %v493, 0
    %497 = vmatpush.bf16.msra.mxu0 0
    %498 = vmatpush.bf16.msra.mxu0 0
    %499 = vmatpush.bf16.msra.mxu0 0
    %500 = vmatpush.bf16.msra.mxu0 0
    %501 = vmatpush.bf16.msra.mxu0 %v232
    %502 = vmatpush.bf16.msra.mxu0 %v231
    %503 = vmatpush.bf16.msra.mxu0 %v230
    %504 = vmatpush.bf16.msra.mxu0 %v229
    %505 = vmatmul.bf16.gmra.mxu0 %v495
    %v506 = vpop.f32.mrf.mxu0
    %v507 = vadd.f32 %v60, %v506
    %v508 = vpop.f32.mrf.mxu0
    %509 = vdwg.mxu0
    %v510 = vxor.u32 %v507, 2147483648
    %v511 = vmul.f32 %v510, 1.442695
    %v512 = vpow.pop %v511
    %v513 = vadd.f32 %v512, 1.0
    %v514 = vrcp.pop %v513
    %v515 = vmul.f32 %v513, %v514
    %v516 = vsub.f32 1.0, %v515
    %v517 = vmul.f32 %v514, %v516
    %v518 = vadd.f32 %v514, %v517
    %vm519 = vweird.f32 %v513
    %vm520 = vweird.f32 %v514
    %vm521 = vmor %vm519, %vm520
    %v522 = vsel %vm521, %v514, %v518
    %v523 = vand.u32 2147483647, %v513
    %vm524 = vcmp.eq.f32.partialorder %v523, 8.507059e+37
    %v525 = vand.u32 %v513, 2147483648
    %v526 = vor.u32 1.1754944e-38, %v525
    %v527 = vsel %vm524, %v526, %v522
    %v528 = vmul.f32 1.0, %v527
    %v529 = vtanh.pop %v507
    %v530 = vmul.f32 %v528, %v412
    %532 = vrot.lane.b32.xlu0 %v529, 32
    %v533 = vpop.permute.xlu0 %532
    %v535 = vmul.f32 %v528, %v533
    %537 = vrot.lane.b32.xlu0 %v535, 32
    %v538 = vpop.permute.xlu0 %537
    %v540 = vadd.f32 %v530, %v538
    %v541 = vtanh.pop %v540
    %543 = vrot.lane.b32.xlu0 %v541, 32
    %v544 = vpop.permute.xlu0 %543
    %v546 = vmul.f32 %v528, %v544
    %vm547 = vcmp.eq.s32.totalorder %v62, 3
    %v548 = vsel %vm547, 1, 0
    %549 = vset.pattern.permute.xlu0 0
    %550 = vperm.xlu0 %549, %v548
    %v551 = vpop.permute.xlu0 %550
    %vm552 = vcmp.eq.s32.totalorder %v551, 1
    %v553 = vsel %vm552, %v546, %v425
    %v554 = vpack.c.bf16 %v483, %v483
    %556 = vrot.lane.b32.xlu0 %v554, 64
    %v557 = vpop.permute.xlu0 %556
    %v559 = vsel %vm152, %v557, 0
    %561 = vmatpush.bf16.msra.mxu0 0
    %562 = vmatpush.bf16.msra.mxu0 0
    %563 = vmatpush.bf16.msra.mxu0 0
    %564 = vmatpush.bf16.msra.mxu0 0
    %565 = vmatpush.bf16.msra.mxu0 0
    %566 = vmatpush.bf16.msra.mxu0 0
    %567 = vmatpush.bf16.msra.mxu0 %v149
    %568 = vmatpush.bf16.msra.mxu0 %v148
    %569 = vmatmul.bf16.gmra.mxu0 %v559
    %v570 = vpop.f32.mrf.mxu0
    %v571 = vadd.f32 0.0, %v570
    %v572 = vpop.f32.mrf.mxu0
    %573 = vdwg.mxu0
    %v574 = vadd.f32 %v128, %v571
    %v575 = vxor.u32 %v574, 2147483648
    %v576 = vmul.f32 %v575, 1.442695
    %v577 = vpow.pop %v576
    %v578 = vadd.f32 %v577, 1.0
    %v579 = vrcp.pop %v578
    %v580 = vmul.f32 %v578, %v579
    %v581 = vsub.f32 1.0, %v580
    %v582 = vmul.f32 %v579, %v581
    %v583 = vadd.f32 %v579, %v582
    %vm584 = vweird.f32 %v578
    %vm585 = vweird.f32 %v579
    %vm586 = vmor %vm584, %vm585
    %v587 = vsel %vm586, %v579, %v583
    %v588 = vand.u32 2147483647, %v578
    %vm589 = vcmp.eq.f32.partialorder %v588, 8.507059e+37
    %v590 = vand.u32 %v578, 2147483648
    %v591 = vor.u32 1.1754944e-38, %v590
    %v592 = vsel %vm589, %v591, %v587
    %v593 = vmul.f32 1.0, %v592
    %v594 = vtanh.pop %v574
    %v595 = vmul.f32 %v593, %v477
    %597 = vrot.lane.b32.xlu0 %v594, 32
    %v598 = vpop.permute.xlu0 %597
    %v600 = vmul.f32 %v593, %v598
    %602 = vrot.lane.b32.xlu0 %v600, 32
    %v603 = vpop.permute.xlu0 %602
    %v605 = vadd.f32 %v595, %v603
    %v606 = vtanh.pop %v605
    %608 = vrot.lane.b32.xlu0 %v606, 32
    %v609 = vpop.permute.xlu0 %608
    %v611 = vmul.f32 %v593, %v609
    %613 = vrot.lane.b32.xlu0 %v611, 64
    %v614 = vpop.permute.xlu0 %613
    %617 = vrot.lane.b32.xlu0 %v546, 96
    %v618 = vpop.permute.xlu0 %617
    %v620 = vsel %vm152, %v614, %v618
    %v621 = vpack.c.bf16 %v620, %v620
    %v623 = vsel %vm237, %v621, 0
    %625 = vmatpush.bf16.msra.mxu0 0
    %626 = vmatpush.bf16.msra.mxu0 0
    %627 = vmatpush.bf16.msra.mxu0 0
    %628 = vmatpush.bf16.msra.mxu0 0
    %629 = vmatpush.bf16.msra.mxu0 %v232
    %630 = vmatpush.bf16.msra.mxu0 %v231
    %631 = vmatpush.bf16.msra.mxu0 %v230
    %632 = vmatpush.bf16.msra.mxu0 %v229
    %633 = vmatmul.bf16.gmra.mxu0 %v623
    %v634 = vpop.f32.mrf.mxu0
    %v635 = vadd.f32 %v60, %v634
    %v636 = vpop.f32.mrf.mxu0
    %637 = vdwg.mxu0
    %v638 = vxor.u32 %v635, 2147483648
    %v639 = vmul.f32 %v638, 1.442695
    %v640 = vpow.pop %v639
    %v641 = vadd.f32 %v640, 1.0
    %v642 = vrcp.pop %v641
    %v643 = vmul.f32 %v641, %v642
    %v644 = vsub.f32 1.0, %v643
    %v645 = vmul.f32 %v642, %v644
    %v646 = vadd.f32 %v642, %v645
    %vm647 = vweird.f32 %v641
    %vm648 = vweird.f32 %v642
    %vm649 = vmor %vm647, %vm648
    %v650 = vsel %vm649, %v642, %v646
    %v651 = vand.u32 2147483647, %v641
    %vm652 = vcmp.eq.f32.partialorder %v651, 8.507059e+37
    %v653 = vand.u32 %v641, 2147483648
    %v654 = vor.u32 1.1754944e-38, %v653
    %v655 = vsel %vm652, %v654, %v650
    %v656 = vmul.f32 1.0, %v655
    %v657 = vtanh.pop %v635
    %v658 = vmul.f32 %v656, %v540
    %660 = vrot.lane.b32.xlu0 %v657, 32
    %v661 = vpop.permute.xlu0 %660
    %v663 = vmul.f32 %v656, %v661
    %665 = vrot.lane.b32.xlu0 %v663, 32
    %v666 = vpop.permute.xlu0 %665
    %v668 = vadd.f32 %v658, %v666
    %v669 = vtanh.pop %v668
    %671 = vrot.lane.b32.xlu0 %v669, 32
    %v672 = vpop.permute.xlu0 %671
    %v674 = vmul.f32 %v656, %v672
    %vm675 = vcmp.eq.s32.totalorder %v62, 4
    %v676 = vsel %vm675, 1, 0
    %677 = vset.pattern.permute.xlu0 0
    %678 = vperm.xlu0 %677, %v676
    %v679 = vpop.permute.xlu0 %678
    %vm680 = vcmp.eq.s32.totalorder %v679, 1
    %v681 = vsel %vm680, %v674, %v553
    %v682 = vpack.c.bf16 %v611, %v611
    %684 = vrot.lane.b32.xlu0 %v682, 64
    %v685 = vpop.permute.xlu0 %684
    %v687 = vsel %vm152, %v685, 0
    %689 = vmatpush.bf16.msra.mxu0 0
    %690 = vmatpush.bf16.msra.mxu0 0
    %691 = vmatpush.bf16.msra.mxu0 0
    %692 = vmatpush.bf16.msra.mxu0 0
    %693 = vmatpush.bf16.msra.mxu0 0
    %694 = vmatpush.bf16.msra.mxu0 0
    %695 = vmatpush.bf16.msra.mxu0 %v149
    %696 = vmatpush.bf16.msra.mxu0 %v148
    %697 = vmatmul.bf16.gmra.mxu0 %v687
    %v698 = vpop.f32.mrf.mxu0
    %v699 = vadd.f32 0.0, %v698
    %v700 = vpop.f32.mrf.mxu0
    %701 = vdwg.mxu0
    %v702 = vadd.f32 %v131, %v699
    %v703 = vxor.u32 %v702, 2147483648
    %v704 = vmul.f32 %v703, 1.442695
    %v705 = vpow.pop %v704
    %v706 = vadd.f32 %v705, 1.0
    %v707 = vrcp.pop %v706
    %v708 = vmul.f32 %v706, %v707
    %v709 = vsub.f32 1.0, %v708
    %v710 = vmul.f32 %v707, %v709
    %v711 = vadd.f32 %v707, %v710
    %vm712 = vweird.f32 %v706
    %vm713 = vweird.f32 %v707
    %vm714 = vmor %vm712, %vm713
    %v715 = vsel %vm714, %v707, %v711
    %v716 = vand.u32 2147483647, %v706
    %vm717 = vcmp.eq.f32.partialorder %v716, 8.507059e+37
    %v718 = vand.u32 %v706, 2147483648
    %v719 = vor.u32 1.1754944e-38, %v718
    %v720 = vsel %vm717, %v719, %v715
    %v721 = vmul.f32 1.0, %v720
    %v722 = vtanh.pop %v702
    %v723 = vmul.f32 %v721, %v605
    %725 = vrot.lane.b32.xlu0 %v722, 32
    %v726 = vpop.permute.xlu0 %725
    %v728 = vmul.f32 %v721, %v726
    %730 = vrot.lane.b32.xlu0 %v728, 32
    %v731 = vpop.permute.xlu0 %730
    %v733 = vadd.f32 %v723, %v731
    %v734 = vtanh.pop %v733
    %736 = vrot.lane.b32.xlu0 %v734, 32
    %v737 = vpop.permute.xlu0 %736
    %v739 = vmul.f32 %v721, %v737
    %741 = vrot.lane.b32.xlu0 %v739, 64
    %v742 = vpop.permute.xlu0 %741
    %745 = vrot.lane.b32.xlu0 %v674, 96
    %v746 = vpop.permute.xlu0 %745
    %v748 = vsel %vm152, %v742, %v746
    %v749 = vpack.c.bf16 %v748, %v748
    %v751 = vsel %vm237, %v749, 0
    %753 = vmatpush.bf16.msra.mxu0 0
    %754 = vmatpush.bf16.msra.mxu0 0
    %755 = vmatpush.bf16.msra.mxu0 0
    %756 = vmatpush.bf16.msra.mxu0 0
    %757 = vmatpush.bf16.msra.mxu0 %v232
    %758 = vmatpush.bf16.msra.mxu0 %v231
    %759 = vmatpush.bf16.msra.mxu0 %v230
    %760 = vmatpush.bf16.msra.mxu0 %v229
    %761 = vmatmul.bf16.gmra.mxu0 %v751
    %v762 = vpop.f32.mrf.mxu0
    %v763 = vadd.f32 %v60, %v762
    %v764 = vpop.f32.mrf.mxu0
    %765 = vdwg.mxu0
    %v766 = vxor.u32 %v763, 2147483648
    %v767 = vmul.f32 %v766, 1.442695
    %v768 = vpow.pop %v767
    %v769 = vadd.f32 %v768, 1.0
    %v770 = vrcp.pop %v769
    %v771 = vmul.f32 %v769, %v770
    %v772 = vsub.f32 1.0, %v771
    %v773 = vmul.f32 %v770, %v772
    %v774 = vadd.f32 %v770, %v773
    %vm775 = vweird.f32 %v769
    %vm776 = vweird.f32 %v770
    %vm777 = vmor %vm775, %vm776
    %v778 = vsel %vm777, %v770, %v774
    %v779 = vand.u32 2147483647, %v769
    %vm780 = vcmp.eq.f32.partialorder %v779, 8.507059e+37
    %v781 = vand.u32 %v769, 2147483648
    %v782 = vor.u32 1.1754944e-38, %v781
    %v783 = vsel %vm780, %v782, %v778
    %v784 = vmul.f32 1.0, %v783
    %v785 = vtanh.pop %v763
    %v786 = vmul.f32 %v784, %v668
    %788 = vrot.lane.b32.xlu0 %v785, 32
    %v789 = vpop.permute.xlu0 %788
    %v791 = vmul.f32 %v784, %v789
    %793 = vrot.lane.b32.xlu0 %v791, 32
    %v794 = vpop.permute.xlu0 %793
    %v796 = vadd.f32 %v786, %v794
    %v797 = vtanh.pop %v796
    %799 = vrot.lane.b32.xlu0 %v797, 32
    %v800 = vpop.permute.xlu0 %799
    %v802 = vmul.f32 %v784, %v800
    %vm803 = vcmp.eq.s32.totalorder %v62, 5
    %v804 = vsel %vm803, 1, 0
    %805 = vset.pattern.permute.xlu0 0
    %806 = vperm.xlu0 %805, %v804
    %v807 = vpop.permute.xlu0 %806
    %vm808 = vcmp.eq.s32.totalorder %v807, 1
    %v809 = vsel %vm808, %v802, %v681
    %v810 = vpack.c.bf16 %v739, %v739
    %812 = vrot.lane.b32.xlu0 %v810, 64
    %v813 = vpop.permute.xlu0 %812
    %v815 = vsel %vm152, %v813, 0
    %817 = vmatpush.bf16.msra.mxu0 0
    %818 = vmatpush.bf16.msra.mxu0 0
    %819 = vmatpush.bf16.msra.mxu0 0
    %820 = vmatpush.bf16.msra.mxu0 0
    %821 = vmatpush.bf16.msra.mxu0 0
    %822 = vmatpush.bf16.msra.mxu0 0
    %823 = vmatpush.bf16.msra.mxu0 %v149
    %824 = vmatpush.bf16.msra.mxu0 %v148
    %825 = vmatmul.bf16.gmra.mxu0 %v815
    %v826 = vpop.f32.mrf.mxu0
    %v827 = vadd.f32 0.0, %v826
    %v828 = vpop.f32.mrf.mxu0
    %829 = vdwg.mxu0
    %v830 = vadd.f32 %v133, %v827
    %v831 = vxor.u32 %v830, 2147483648
    %v832 = vmul.f32 %v831, 1.442695
    %v833 = vpow.pop %v832
    %v834 = vadd.f32 %v833, 1.0
    %v835 = vrcp.pop %v834
    %v836 = vmul.f32 %v834, %v835
    %v837 = vsub.f32 1.0, %v836
    %v838 = vmul.f32 %v835, %v837
    %v839 = vadd.f32 %v835, %v838
    %vm840 = vweird.f32 %v834
    %vm841 = vweird.f32 %v835
    %vm842 = vmor %vm840, %vm841
    %v843 = vsel %vm842, %v835, %v839
    %v844 = vand.u32 2147483647, %v834
    %vm845 = vcmp.eq.f32.partialorder %v844, 8.507059e+37
    %v846 = vand.u32 %v834, 2147483648
    %v847 = vor.u32 1.1754944e-38, %v846
    %v848 = vsel %vm845, %v847, %v843
    %v849 = vmul.f32 1.0, %v848
    %v850 = vtanh.pop %v830
    %v851 = vmul.f32 %v849, %v733
    %853 = vrot.lane.b32.xlu0 %v850, 32
    %v854 = vpop.permute.xlu0 %853
    %v856 = vmul.f32 %v849, %v854
    %858 = vrot.lane.b32.xlu0 %v856, 32
    %v859 = vpop.permute.xlu0 %858
    %v861 = vadd.f32 %v851, %v859
    %v862 = vtanh.pop %v861
    %864 = vrot.lane.b32.xlu0 %v862, 32
    %v865 = vpop.permute.xlu0 %864
    %v867 = vmul.f32 %v849, %v865
    %869 = vrot.lane.b32.xlu0 %v867, 64
    %v870 = vpop.permute.xlu0 %869
    %873 = vrot.lane.b32.xlu0 %v802, 96
    %v874 = vpop.permute.xlu0 %873
    %v876 = vsel %vm152, %v870, %v874
    %v877 = vpack.c.bf16 %v876, %v876
    %v879 = vsel %vm237, %v877, 0
    %881 = vmatpush.bf16.msra.mxu0 0
    %882 = vmatpush.bf16.msra.mxu0 0
    %883 = vmatpush.bf16.msra.mxu0 0
    %884 = vmatpush.bf16.msra.mxu0 0
    %885 = vmatpush.bf16.msra.mxu0 %v232
    %886 = vmatpush.bf16.msra.mxu0 %v231
    %887 = vmatpush.bf16.msra.mxu0 %v230
    %888 = vmatpush.bf16.msra.mxu0 %v229
    %889 = vmatmul.bf16.gmra.mxu0 %v879
    %v890 = vpop.f32.mrf.mxu0
    %v891 = vadd.f32 %v60, %v890
    %v892 = vpop.f32.mrf.mxu0
    %893 = vdwg.mxu0
    %v894 = vxor.u32 %v891, 2147483648
    %v895 = vmul.f32 %v894, 1.442695
    %v896 = vpow.pop %v895
    %v897 = vadd.f32 %v896, 1.0
    %v898 = vrcp.pop %v897
    %v899 = vmul.f32 %v897, %v898
    %v900 = vsub.f32 1.0, %v899
    %v901 = vmul.f32 %v898, %v900
    %v902 = vadd.f32 %v898, %v901
    %vm903 = vweird.f32 %v897
    %vm904 = vweird.f32 %v898
    %vm905 = vmor %vm903, %vm904
    %v906 = vsel %vm905, %v898, %v902
    %v907 = vand.u32 2147483647, %v897
    %vm908 = vcmp.eq.f32.partialorder %v907, 8.507059e+37
    %v909 = vand.u32 %v897, 2147483648
    %v910 = vor.u32 1.1754944e-38, %v909
    %v911 = vsel %vm908, %v910, %v906
    %v912 = vmul.f32 1.0, %v911
    %v913 = vtanh.pop %v891
    %v914 = vmul.f32 %v912, %v796
    %916 = vrot.lane.b32.xlu0 %v913, 32
    %v917 = vpop.permute.xlu0 %916
    %v919 = vmul.f32 %v912, %v917
    %921 = vrot.lane.b32.xlu0 %v919, 32
    %v922 = vpop.permute.xlu0 %921
    %v924 = vadd.f32 %v914, %v922
    %v925 = vtanh.pop %v924
    %927 = vrot.lane.b32.xlu0 %v925, 32
    %v928 = vpop.permute.xlu0 %927
    %v930 = vmul.f32 %v912, %v928
    %vm931 = vcmp.eq.s32.totalorder %v62, 6
    %v932 = vsel %vm931, 1, 0
    %933 = vset.pattern.permute.xlu0 0
    %934 = vperm.xlu0 %933, %v932
    %v935 = vpop.permute.xlu0 %934
    %vm936 = vcmp.eq.s32.totalorder %v935, 1
    %v937 = vsel %vm936, %v930, %v809
    %v938 = vpack.c.bf16 %v867, %v867
    %940 = vrot.lane.b32.xlu0 %v938, 64
    %v941 = vpop.permute.xlu0 %940
    %v943 = vsel %vm152, %v941, 0
    %945 = vmatpush.bf16.msra.mxu0 0
    %946 = vmatpush.bf16.msra.mxu0 0
    %947 = vmatpush.bf16.msra.mxu0 0
    %948 = vmatpush.bf16.msra.mxu0 0
    %949 = vmatpush.bf16.msra.mxu0 0
    %950 = vmatpush.bf16.msra.mxu0 0
    %951 = vmatpush.bf16.msra.mxu0 %v149
    %952 = vmatpush.bf16.msra.mxu0 %v148
    %953 = vmatmul.bf16.gmra.mxu0 %v943
    %v954 = vpop.f32.mrf.mxu0
    %v955 = vadd.f32 0.0, %v954
    %v956 = vpop.f32.mrf.mxu0
    %957 = vdwg.mxu0
    %v958 = vadd.f32 %v136, %v955
    %v959 = vxor.u32 %v958, 2147483648
    %v960 = vmul.f32 %v959, 1.442695
    %v961 = vpow.pop %v960
    %v962 = vadd.f32 %v961, 1.0
    %v963 = vrcp.pop %v962
    %v964 = vmul.f32 %v962, %v963
    %v965 = vsub.f32 1.0, %v964
    %v966 = vmul.f32 %v963, %v965
    %v967 = vadd.f32 %v963, %v966
    %vm968 = vweird.f32 %v962
    %vm969 = vweird.f32 %v963
    %vm970 = vmor %vm968, %vm969
    %v971 = vsel %vm970, %v963, %v967
    %v972 = vand.u32 2147483647, %v962
    %vm973 = vcmp.eq.f32.partialorder %v972, 8.507059e+37
    %v974 = vand.u32 %v962, 2147483648
    %v975 = vor.u32 1.1754944e-38, %v974
    %v976 = vsel %vm973, %v975, %v971
    %v977 = vmul.f32 1.0, %v976
    %v978 = vtanh.pop %v958
    %v979 = vmul.f32 %v977, %v861
    %981 = vrot.lane.b32.xlu0 %v978, 32
    %v982 = vpop.permute.xlu0 %981
    %v984 = vmul.f32 %v977, %v982
    %986 = vrot.lane.b32.xlu0 %v984, 32
    %v987 = vpop.permute.xlu0 %986
    %v989 = vadd.f32 %v979, %v987
    %v990 = vtanh.pop %v989
    %992 = vrot.lane.b32.xlu0 %v990, 32
    %v993 = vpop.permute.xlu0 %992
    %v995 = vmul.f32 %v977, %v993
    %997 = vrot.lane.b32.xlu0 %v995, 64
    %v998 = vpop.permute.xlu0 %997
    %1001 = vrot.lane.b32.xlu0 %v930, 96
    %v1002 = vpop.permute.xlu0 %1001
    %v1004 = vsel %vm152, %v998, %v1002
    %v1005 = vpack.c.bf16 %v1004, %v1004
    %v1007 = vsel %vm237, %v1005, 0
    %1009 = vmatpush.bf16.msra.mxu0 0
    %1010 = vmatpush.bf16.msra.mxu0 0
    %1011 = vmatpush.bf16.msra.mxu0 0
    %1012 = vmatpush.bf16.msra.mxu0 0
    %1013 = vmatpush.bf16.msra.mxu0 %v232
    %1014 = vmatpush.bf16.msra.mxu0 %v231
    %1015 = vmatpush.bf16.msra.mxu0 %v230
    %1016 = vmatpush.bf16.msra.mxu0 %v229
    %1017 = vmatmul.bf16.gmra.mxu0 %v1007
    %v1018 = vpop.f32.mrf.mxu0
    %v1019 = vadd.f32 %v60, %v1018
    %v1020 = vpop.f32.mrf.mxu0
    %1021 = vdwg.mxu0
    %v1022 = vxor.u32 %v1019, 2147483648
    %v1023 = vmul.f32 %v1022, 1.442695
    %v1024 = vpow.pop %v1023
    %v1025 = vadd.f32 %v1024, 1.0
    %v1026 = vrcp.pop %v1025
    %v1027 = vmul.f32 %v1025, %v1026
    %v1028 = vsub.f32 1.0, %v1027
    %v1029 = vmul.f32 %v1026, %v1028
    %v1030 = vadd.f32 %v1026, %v1029
    %vm1031 = vweird.f32 %v1025
    %vm1032 = vweird.f32 %v1026
    %vm1033 = vmor %vm1031, %vm1032
    %v1034 = vsel %vm1033, %v1026, %v1030
    %v1035 = vand.u32 2147483647, %v1025
    %vm1036 = vcmp.eq.f32.partialorder %v1035, 8.507059e+37
    %v1037 = vand.u32 %v1025, 2147483648
    %v1038 = vor.u32 1.1754944e-38, %v1037
    %v1039 = vsel %vm1036, %v1038, %v1034
    %v1040 = vmul.f32 1.0, %v1039
    %v1041 = vtanh.pop %v1019
    %v1042 = vmul.f32 %v1040, %v924
    %1044 = vrot.lane.b32.xlu0 %v1041, 32
    %v1045 = vpop.permute.xlu0 %1044
    %v1047 = vmul.f32 %v1040, %v1045
    %1049 = vrot.lane.b32.xlu0 %v1047, 32
    %v1050 = vpop.permute.xlu0 %1049
    %v1052 = vadd.f32 %v1042, %v1050
    %v1053 = vtanh.pop %v1052
    %1055 = vrot.lane.b32.xlu0 %v1053, 32
    %v1056 = vpop.permute.xlu0 %1055
    %v1058 = vmul.f32 %v1040, %v1056
    %vm1059 = vcmp.eq.s32.totalorder %v62, 7
    %v1060 = vsel %vm1059, 1, 0
    %1061 = vset.pattern.permute.xlu0 0
    %1062 = vperm.xlu0 %1061, %v1060
    %v1063 = vpop.permute.xlu0 %1062
    %vm1064 = vcmp.eq.s32.totalorder %v1063, 1
    %v1065 = vsel %vm1064, %v1058, %v937
    %v1066 = vpack.c.bf16 %v995, %v995
    %1068 = vrot.lane.b32.xlu0 %v1066, 64
    %v1069 = vpop.permute.xlu0 %1068
    %v1071 = vsel %vm152, %v1069, 0
    %1073 = vmatpush.bf16.msra.mxu0 0
    %1074 = vmatpush.bf16.msra.mxu0 0
    %1075 = vmatpush.bf16.msra.mxu0 0
    %1076 = vmatpush.bf16.msra.mxu0 0
    %1077 = vmatpush.bf16.msra.mxu0 0
    %1078 = vmatpush.bf16.msra.mxu0 0
    %1079 = vmatpush.bf16.msra.mxu0 %v149
    %1080 = vmatpush.bf16.msra.mxu0 %v148
    %1081 = vmatmul.bf16.gmra.mxu0 %v1071
    %v1082 = vpop.f32.mrf.mxu0
    %v1083 = vadd.f32 0.0, %v1082
    %v1084 = vpop.f32.mrf.mxu0
    %1085 = vdwg.mxu0
    %v1086 = vadd.f32 %v138, %v1083
    %v1087 = vxor.u32 %v1086, 2147483648
    %v1088 = vmul.f32 %v1087, 1.442695
    %v1089 = vpow.pop %v1088
    %v1090 = vadd.f32 %v1089, 1.0
    %v1091 = vrcp.pop %v1090
    %v1092 = vmul.f32 %v1090, %v1091
    %v1093 = vsub.f32 1.0, %v1092
    %v1094 = vmul.f32 %v1091, %v1093
    %v1095 = vadd.f32 %v1091, %v1094
    %vm1096 = vweird.f32 %v1090
    %vm1097 = vweird.f32 %v1091
    %vm1098 = vmor %vm1096, %vm1097
    %v1099 = vsel %vm1098, %v1091, %v1095
    %v1100 = vand.u32 2147483647, %v1090
    %vm1101 = vcmp.eq.f32.partialorder %v1100, 8.507059e+37
    %v1102 = vand.u32 %v1090, 2147483648
    %v1103 = vor.u32 1.1754944e-38, %v1102
    %v1104 = vsel %vm1101, %v1103, %v1099
    %v1105 = vmul.f32 1.0, %v1104
    %v1106 = vtanh.pop %v1086
    %v1107 = vmul.f32 %v1105, %v989
    %1109 = vrot.lane.b32.xlu0 %v1106, 32
    %v1110 = vpop.permute.xlu0 %1109
    %v1112 = vmul.f32 %v1105, %v1110
    %1114 = vrot.lane.b32.xlu0 %v1112, 32
    %v1115 = vpop.permute.xlu0 %1114
    %v1117 = vadd.f32 %v1107, %v1115
    %v1118 = vtanh.pop %v1117
    %1120 = vrot.lane.b32.xlu0 %v1118, 32
    %v1121 = vpop.permute.xlu0 %1120
    %v1123 = vmul.f32 %v1105, %v1121
    %1125 = vrot.lane.b32.xlu0 %v1123, 64
    %v1126 = vpop.permute.xlu0 %1125
    %1129 = vrot.lane.b32.xlu0 %v1058, 96
    %v1130 = vpop.permute.xlu0 %1129
    %v1132 = vsel %vm152, %v1126, %v1130
    %v1133 = vpack.c.bf16 %v1132, %v1132
    %v1135 = vsel %vm237, %v1133, 0
    %1137 = vmatpush.bf16.msra.mxu0 0
    %1138 = vmatpush.bf16.msra.mxu0 0
    %1139 = vmatpush.bf16.msra.mxu0 0
    %1140 = vmatpush.bf16.msra.mxu0 0
    %1141 = vmatpush.bf16.msra.mxu0 %v232
    %1142 = vmatpush.bf16.msra.mxu0 %v231
    %1143 = vmatpush.bf16.msra.mxu0 %v230
    %1144 = vmatpush.bf16.msra.mxu0 %v229
    %1145 = vmatmul.bf16.gmra.mxu0 %v1135
    %v1146 = vpop.f32.mrf.mxu0
    %v1147 = vadd.f32 %v60, %v1146
    %v1148 = vpop.f32.mrf.mxu0
    %1149 = vdwg.mxu0
    %v1150 = vxor.u32 %v1147, 2147483648
    %v1151 = vmul.f32 %v1150, 1.442695
    %v1152 = vpow.pop %v1151
    %v1153 = vadd.f32 %v1152, 1.0
    %v1154 = vrcp.pop %v1153
    %v1155 = vmul.f32 %v1153, %v1154
    %v1156 = vsub.f32 1.0, %v1155
    %v1157 = vmul.f32 %v1154, %v1156
    %v1158 = vadd.f32 %v1154, %v1157
    %vm1159 = vweird.f32 %v1153
    %vm1160 = vweird.f32 %v1154
    %vm1161 = vmor %vm1159, %vm1160
    %v1162 = vsel %vm1161, %v1154, %v1158
    %v1163 = vand.u32 2147483647, %v1153
    %vm1164 = vcmp.eq.f32.partialorder %v1163, 8.507059e+37
    %v1165 = vand.u32 %v1153, 2147483648
    %v1166 = vor.u32 1.1754944e-38, %v1165
    %v1167 = vsel %vm1164, %v1166, %v1162
    %v1168 = vmul.f32 1.0, %v1167
    %v1169 = vtanh.pop %v1147
    %v1170 = vmul.f32 %v1168, %v1052
    %1172 = vrot.lane.b32.xlu0 %v1169, 32
    %v1173 = vpop.permute.xlu0 %1172
    %v1175 = vmul.f32 %v1168, %v1173
    %1177 = vrot.lane.b32.xlu0 %v1175, 32
    %v1178 = vpop.permute.xlu0 %1177
    %v1180 = vadd.f32 %v1170, %v1178
    %v1181 = vtanh.pop %v1180
    %1183 = vrot.lane.b32.xlu0 %v1181, 32
    %v1184 = vpop.permute.xlu0 %1183
    %v1186 = vmul.f32 %v1168, %v1184
    %vm1187 = vcmp.eq.s32.totalorder %v62, 8
    %v1188 = vsel %vm1187, 1, 0
    %1189 = vset.pattern.permute.xlu0 0
    %1190 = vperm.xlu0 %1189, %v1188
    %v1191 = vpop.permute.xlu0 %1190
    %vm1192 = vcmp.eq.s32.totalorder %v1191, 1
    %v1193 = vsel %vm1192, %v1186, %v1065
    %1195 = vrot.lane.b32.xlu0 %v1193, 64
    %v1196 = vpop.permute.xlu0 %1195
    %1198 = vst.msk [vmem:[#allocation5] sm:$0xff] %vm152, %v1196
    // Predicated region
    $region34: #{tpu_custom_call.1} parent=1 // pred_check
      _
    $region35: #{tpu_custom_call.1} parent=1 // pred_check_branch
      %1200 = sbr.rel (0) target = $region37
    $region36: #{tpu_custom_call.1} parent=1 // pred_region
      %1202 = vsyncadd [#allocation4], 0
      %s1204 = sshll.u32 [#allocation5], 4
      %s1205 = int_to_ptr.vmem [resolvable:$true] %s1204
      %s1206 = sshll.u32 %s7, 4
      %s1207 = int_to_ptr.hbm [resolvable:$true] %s1206
      %1209 = dma.vmem_to_hbm [thread:$0]  %s1205, 128, %s1207, [#allocation4]
    $region37: #{tpu_custom_call.1} parent=1 // pred_fallthru
      _
    // Predicated region
    $region38: #{tpu_custom_call.1} parent=1 // pred_check
      _
    $region39: #{tpu_custom_call.1} parent=1 // pred_check_branch
      %1211 = sbr.rel (0) target = $region41
    $region40: #{tpu_custom_call.1} parent=1 // pred_region
      %1213 = dma.done [#allocation4], 128
    $region41: #{tpu_custom_call.1} parent=1 // pred_fallthru
      _
    %1214 = vsyncpa [#allocation3], 1
    %1215 = vsyncpa [#allocation4], 1

</llo_original>
